<compile_context>
chip_gen: v7x
topology: tpu7x:2x2x1
jax: 0.10.0
libtpu: 0.0.40
codegen_flags: <defaults>
</compile_context>

<pallas_src>
import functools

import jax
import jax.numpy as jnp
from jax import lax
from jax.experimental import pallas as pl
from jax.experimental.pallas import tpu as pltpu

EPS = 1e-6
LANE = 128
_INV_SQRT2 = 0.7071067811865475


def _round_up(n, m):
    return ((n + m - 1) // m) * m


def _pad_to(a, axis, size):
    pad = size - a.shape[axis]
    if pad <= 0:
        return a
    cfg = [(0, 0)] * a.ndim
    cfg[axis] = (0, pad)
    return jnp.pad(a, cfg)


def _gelu_exact(x):
    # matches torch.nn.GELU() default (erf-based); tanh-approx would move this to
    # the EUP but exact parity with the reference module is kept.
    return 0.5 * x * (1.0 + lax.erf(x * _INV_SQRT2))


@functools.lru_cache(maxsize=None)
def _vmem_limit_bytes():
    """Generation-aware VMEM budget: ~3/4 of per-core VMEM.
    v5e / v6e have 128 MiB per TensorCore, v7x has 64 MiB."""
    cap = 0
    try:
        cap = int(pltpu.get_tpu_info().vmem_capacity_bytes)
    except Exception:
        cap = 0
    if cap <= 0:
        try:
            kind = jax.devices()[0].device_kind.lower()
        except Exception:
            kind = ""
        big = any(t in kind for t in ("v5 lite", "v5e", "v6 lite", "v6e", "trillium"))
        cap = (128 if big else 64) << 20
    cap = min(cap, 128 << 20)
    return int(min(cap * 3 // 4, 100 << 20))


def _pick_tile(H, per_row_bytes, budget_bytes, min_strips=1):
    """Largest divisor of H whose estimated strip footprint fits the VMEM budget,
    keeping at least `min_strips` grid steps along H (keeps both v7x TensorCores
    busy even at batch 1 and exercises the halo path).
    A production kernel would also handle H % TH != 0 via pl.cdiv + a masked
    last strip instead of requiring a divisor."""
    min_strips = max(1, min(min_strips, H))
    budget_rows = max(1, budget_bytes // max(per_row_bytes, 1))
    th = 1
    for d in range(1, H + 1):
        if H % d == 0 and d <= budget_rows and H // d >= min_strips:
            th = d
    return th


# ----------------------------------------------------------------------------
# ConvBlock: depthwise3x3 -> LayerNorm2d -> 1x1 -> GELU -> 1x1 -> layer_scale
#            (+ Dropout2d, identity in eval) + residual 1x1 conv.
# LN affine folded into pw1; layer_scale folded into the merged pw2|residual
# matmul.  One fused kernel, row-strip tiled: grid = (N, H // TH).
# ----------------------------------------------------------------------------
def conv_block_kernel(xc_ref, xt_ref, xb_ref, dw_w_ref, dw_b_ref,
                      pw1_w_ref, pw1_b_ref, pw2r_w_ref, pw2r_b_ref,
                      o_ref, *, cin_real):
    s = pl.program_id(1)
    ns = pl.num_programs(1)
    TH, W, Cp = xc_ref.shape
    Cop = pw1_w_ref.shape[1]
    M = TH * W
    ME = (TH + 2) * W

    xc = xc_ref[...]                                      # (TH, W, Cp) center strip
    top = xt_ref[...] * (s > 0).astype(xc.dtype)          # halo rows; zero at edges
    bot = xb_ref[...] * (s < ns - 1).astype(xc.dtype)
    xe = jnp.concatenate([top, xc, bot], axis=0).astype(jnp.float32)  # (TH+2, W, Cp)
    # TODO(synk): the concatenate copy could be removed with an overlapping
    # pl.Element H-window or a manual DMA of the three pieces into one scratch.
    xe2 = xe.reshape(ME, Cp)
    col = lax.broadcasted_iota(jnp.int32, (1, W, Cp), 1)

    # Depthwise 3x3 (cross-correlation, padding=1).  dx-outer so only one
    # horizontally shifted copy (one XLU roll + edge mask) is live at a time;
    # vertical taps are leading-dim slices.
    acc = None
    for dx in (1, 0, 2):
        if dx == 1:
            src = xe
        elif dx == 0:
            src = pltpu.roll(xe2, 1, 0).reshape(TH + 2, W, Cp)       # src[r,w]=xe[r,w-1]
            src = src * (col > 0).astype(jnp.float32)
        else:
            src = pltpu.roll(xe2, ME - 1, 0).reshape(TH + 2, W, Cp)  # src[r,w]=xe[r,w+1]
            src = src * (col < W - 1).astype(jnp.float32)
        for dy in range(3):
            term = src[dy:dy + TH] * dw_w_ref[dy, dx, :]
            acc = term if acc is None else acc + term
    dwf = (acc + dw_b_ref[0]).reshape(M, Cp)

    # LayerNorm2d statistics over the real channel count (padded lanes are zero);
    # variance clamped to avoid E[x^2]-E[x]^2 cancellation going negative.
    inv_c = 1.0 / cin_real
    u = jnp.sum(dwf, axis=-1, keepdims=True) * inv_c
    var = jnp.sum(dwf * dwf, axis=-1, keepdims=True) * inv_c - u * u
    xn = (dwf - u) * lax.rsqrt(jnp.maximum(var, 0.0) + EPS)
    # (LN affine is folded into pw1_w / pw1_b at prep time.)

    # 1x1 convs on the MXU: bf16 operands, f32 accumulation.
    h = jnp.dot(xn.astype(jnp.bfloat16), pw1_w_ref[...],
                preferred_element_type=jnp.float32) + pw1_b_ref[0]
    h = _gelu_exact(h)

    # Merged (layer_scale * pw2 | residual 1x1) matmul: [g | x] @ [[W2'],[Wr]] + b.
    hg = jnp.concatenate(
        [h.astype(jnp.bfloat16), xc.reshape(M, Cp).astype(jnp.bfloat16)], axis=-1)
    out = jnp.dot(hg, pw2r_w_ref[...],
                  preferred_element_type=jnp.float32) + pw2r_b_ref[0]

    # TODO(synk): Dropout2d(p=0.1) drop_path is identity here (eval mode);
    # training-time random channel dropping is not implemented.
    o_ref[...] = out.reshape(TH, W, Cop).astype(o_ref.dtype)


def conv_block(x, p):
    N, H, W, cp = x.shape
    cop = p["pw1_w"].shape[1]
    vmem = _vmem_limit_bytes()
    # Rough live footprint per strip row: f32 intermediates (extended strip, one
    # shifted copy, depthwise acc, matmul activations) + bf16 I/O double-buffers.
    per_row = 4 * W * (3 * cp + 3 * cop) + 4 * W * (cp + cop)
    TH = _pick_tile(H, per_row, vmem // 2, min_strips=2 if H >= 4 else 1)
    S = H // TH

    def fullspec(a):
        return pl.BlockSpec(a.shape, lambda b, s, _nd=a.ndim: (0,) * _nd)

    # TODO(synk): on v7x, mark the constant weight specs pipeline_mode=pl.Buffered(1)
    # (or stage them once into scratch) to avoid double-buffering them in 64 MiB VMEM.
    kernel = functools.partial(conv_block_kernel, cin_real=p["cin_real"])
    return pl.pallas_call(
        kernel,
        out_shape=jax.ShapeDtypeStruct((N, H, W, cop), jnp.bfloat16),
        grid=(N, S),
        in_specs=[
            # center strip
            pl.BlockSpec((None, TH, W, cp), lambda b, s: (b, s, 0, 0)),
            # 1-row top / bottom halos (clamped; zeroed at image edges in-kernel)
            pl.BlockSpec((None, 1, W, cp),
                         lambda b, s: (b, jnp.maximum(s * TH - 1, 0), 0, 0)),
            pl.BlockSpec((None, 1, W, cp),
                         lambda b, s: (b, jnp.minimum(s * TH + TH, H - 1), 0, 0)),
            fullspec(p["dw_w"]), fullspec(p["dw_b"]),
            fullspec(p["pw1_w"]), fullspec(p["pw1_b"]),
            fullspec(p["pw2r_w"]), fullspec(p["pw2r_b"]),
        ],
        out_specs=pl.BlockSpec((None, TH, W, cop), lambda b, s: (b, s, 0, 0)),
        compiler_params=pltpu.CompilerParams(
            dimension_semantics=("parallel", "parallel"),
            vmem_limit_bytes=vmem),
    )(x, x, x, p["dw_w"], p["dw_b"], p["pw1_w"], p["pw1_b"],
      p["pw2r_w"], p["pw2r_b"])


# ----------------------------------------------------------------------------
# Downsample: Conv2d(C, C, kernel_size=2, stride=2), fused in-kernel.
# One contiguous input block carries both row parities; split in-kernel.
# ----------------------------------------------------------------------------
def downsample_kernel(x_ref, w0_ref, w1_ref, b_ref, o_ref):
    THo, _, Wo, C2 = x_ref.shape
    m = THo * Wo
    x = x_ref[...]                                        # (THo, 2, Wo, 2C) bf16
    xe = x[:, 0].reshape(m, C2).astype(jnp.bfloat16)      # even input rows
    xo = x[:, 1].reshape(m, C2).astype(jnp.bfloat16)      # odd input rows
    acc = jnp.dot(xe, w0_ref[...], preferred_element_type=jnp.float32)
    acc = acc + jnp.dot(xo, w1_ref[...], preferred_element_type=jnp.float32)
    acc = acc + b_ref[0]
    o_ref[...] = acc.reshape(THo, Wo, -1).astype(o_ref.dtype)


def downsample(x, p):
    N, H, W, cp = x.shape
    Ho, Wo = H // 2, W // 2
    cop = p["b"].shape[-1]
    # Free row-major regroup: pairs the two column taps on the lane axis.
    x5 = x.reshape(N, Ho, 2, Wo, 2 * cp)
    vmem = _vmem_limit_bytes()
    per_row = 16 * Wo * cp + 8 * Wo * cop
    THo = _pick_tile(Ho, per_row, vmem // 2, min_strips=2 if Ho >= 4 else 1)
    S = Ho // THo
    return pl.pallas_call(
        downsample_kernel,
        out_shape=jax.ShapeDtypeStruct((N, Ho, Wo, cop), jnp.bfloat16),
        grid=(N, S),
        in_specs=[
            pl.BlockSpec((None, THo, 2, Wo, 2 * cp), lambda b, s: (b, s, 0, 0, 0)),
            pl.BlockSpec(p["w0"].shape, lambda b, s: (0, 0)),
            pl.BlockSpec(p["w1"].shape, lambda b, s: (0, 0)),
            pl.BlockSpec(p["b"].shape, lambda b, s: (0, 0)),
        ],
        out_specs=pl.BlockSpec((None, THo, Wo, cop), lambda b, s: (b, s, 0, 0)),
        compiler_params=pltpu.CompilerParams(
            dimension_semantics=("parallel", "parallel"),
            vmem_limit_bytes=vmem),
    )(x5, p["w0"], p["w1"], p["b"])


# ----------------------------------------------------------------------------
# Deterministic parameter init (synthetic; mirrors module shapes).  Matmul
# weights are pre-rounded through bf16 so kernel and reference share the same
# base weights; LN affine / layer_scale are non-trivial to exercise the folding.
# ----------------------------------------------------------------------------
def init_conv_block(key, cin, cout):
    ks = jax.random.split(key, 11)
    rnd = lambda k, shape, sc: jax.random.normal(k, shape, jnp.float32) * sc
    q = lambda a: a.astype(jnp.bfloat16).astype(jnp.float32)
    return {
        "dw_w": rnd(ks[0], (3, 3, cin), 0.2),             # torch: (cin,1,3,3)
        "dw_b": rnd(ks[1], (1, cin), 0.1),
        "ln_w": 1.0 + rnd(ks[2], (1, cin), 0.1),
        "ln_b": rnd(ks[3], (1, cin), 0.05),
        "pw1_w": q(rnd(ks[4], (cin, cout), 0.2)),
        "pw1_b": rnd(ks[5], (1, cout), 0.1),
        "pw2_w": q(rnd(ks[6], (cout, cout), 0.2)),
        "pw2_b": rnd(ks[7], (1, cout), 0.1),
        "scale": 1.0 + rnd(ks[8], (1, cout), 0.1),
        "res_w": q(rnd(ks[9], (cin, cout), 0.2)),
        "res_b": rnd(ks[10], (1, cout), 0.1),
    }


def init_downsample(key, c):
    k1, k2 = jax.random.split(key)
    q = lambda a: a.astype(jnp.bfloat16).astype(jnp.float32)
    return {"w": q(jax.random.normal(k1, (2, 2, c, c), jnp.float32) * 0.2),  # HWIO
            "b": jax.random.normal(k2, (1, c), jnp.float32) * 0.1}


def init_feature_extractor(key, in_channels, block_channels):
    params = []
    keys = jax.random.split(key, 2 * len(block_channels))
    prev = in_channels
    for i, c in enumerate(block_channels):
        if i > 0:
            params.append(("down", init_downsample(keys[2 * i], prev)))
        params.append(("block", init_conv_block(keys[2 * i + 1], prev, c)))
        prev = c
    return params


# Kernel-side parameters: channels zero-padded to LANE, LN affine folded into
# pw1, layer_scale folded into the merged pw2|residual weight, matmuls in bf16.
def prep_conv_block(p):
    cin, cout = p["pw1_w"].shape
    cp, cop = _round_up(cin, LANE), _round_up(cout, LANE)
    ln_w, ln_b = p["ln_w"][0], p["ln_b"][0]
    scale = p["scale"][0]
    w1 = p["pw1_w"] * ln_w[:, None]                       # W1' = diag(ln_w) @ W1
    b1 = p["pw1_b"][0] + ln_b @ p["pw1_w"]                # b1' = ln_b @ W1 + b1
    w2 = p["pw2_w"] * scale[None, :]                      # W2' = W2 * scale (cols)
    b2r = p["pw2_b"][0] * scale + p["res_b"][0]           # b2*scale + res_b
    w2r = jnp.concatenate([_pad_to(_pad_to(w2, 0, cop), 1, cop),
                           _pad_to(_pad_to(p["res_w"], 0, cp), 1, cop)], axis=0)
    return {
        "cin_real": cin,
        "dw_w": _pad_to(p["dw_w"], 2, cp),
        "dw_b": _pad_to(p["dw_b"], 1, cp),
        "pw1_w": _pad_to(_pad_to(w1, 0, cp), 1, cop).astype(jnp.bfloat16),
        "pw1_b": _pad_to(b1[None, :], 1, cop),
        "pw2r_w": w2r.astype(jnp.bfloat16),                # (cop + cp, cop)
        "pw2r_b": _pad_to(b2r[None, :], 1, cop),
    }


def prep_downsample(p):
    c = p["b"].shape[-1]
    cp = _round_up(c, LANE)
    w = _pad_to(_pad_to(p["w"], 2, cp), 3, cp)             # (2, 2, cp, cp) HWIO
    return {"w0": w[0].reshape(2 * cp, cp).astype(jnp.bfloat16),
            "w1": w[1].reshape(2 * cp, cp).astype(jnp.bfloat16),
            "b": _pad_to(p["b"], 1, cp)}


def prepare_params(params):
    return [(k, prep_downsample(p) if k == "down" else prep_conv_block(p))
            for k, p in params]


def feature_extractor(x_nhwc, kparams, out_channels):
    # Encoder input stays f32 (LN over 3 channels amplifies quantization noise);
    # all inter-layer activations are bf16.
    x = _pad_to(x_nhwc, 3, _round_up(x_nhwc.shape[-1], LANE))
    for kind, p in kparams:
        x = downsample(x, p) if kind == "down" else conv_block(x, p)
    return x[..., :out_channels].astype(jnp.float32)


# ----------------------------------------------------------------------------
# Pure-JAX f32 reference (independent path via lax.conv_general_dilated)
# ----------------------------------------------------------------------------
def conv_block_ref(x, p):
    dn = ('NHWC', 'HWIO', 'NHWC')
    cin = x.shape[-1]
    res = jnp.einsum('nhwc,cd->nhwd', x, p["res_w"]) + p["res_b"][0]
    dw = lax.conv_general_dilated(x, p["dw_w"].reshape(3, 3, 1, cin),
                                  window_strides=(1, 1), padding='SAME',
                                  dimension_numbers=dn, feature_group_count=cin)
    dw = dw + p["dw_b"][0]
    u = dw.mean(-1, keepdims=True)
    s = ((dw - u) ** 2).mean(-1, keepdims=True)
    xn = (dw - u) / jnp.sqrt(s + EPS)
    xn = p["ln_w"][0] * xn + p["ln_b"][0]
    h = jnp.einsum('nhwc,cd->nhwd', xn, p["pw1_w"]) + p["pw1_b"][0]
    h = jax.nn.gelu(h, approximate=False)
    h = jnp.einsum('nhwc,cd->nhwd', h, p["pw2_w"]) + p["pw2_b"][0]
    return p["scale"][0] * h + res


def downsample_ref(x, p):
    dn = ('NHWC', 'HWIO', 'NHWC')
    return lax.conv_general_dilated(x, p["w"], window_strides=(2, 2),
                                    padding='VALID', dimension_numbers=dn) + p["b"][0]


def feature_extractor_ref(x, params):
    for kind, p in params:
        x = downsample_ref(x, p) if kind == "down" else conv_block_ref(x, p)
    return x


if __name__ == "__main__":
    # Small module-consistent shapes: batch=2, in_channels=3, spatial=16,
    # block_channels scaled down from [64,128,256,512,768] to [8,16,32].
    key = jax.random.PRNGKey(0)
    k_x, k_p = jax.random.split(key)
    in_channels = 3
    block_channels = [8, 16, 32]

    x_nchw = jax.random.normal(k_x, (2, in_channels, 16, 16), jnp.float32)  # torch NCHW
    x_nhwc = jnp.transpose(x_nchw, (0, 2, 3, 1))                            # kernel NHWC

    params = init_feature_extractor(k_p, in_channels, block_channels)
    kparams = prepare_params(params)

    out = jax.block_until_ready(feature_extractor(x_nhwc, kparams, block_channels[-1]))
    ref = jax.block_until_ready(feature_extractor_ref(x_nhwc, params))

    assert out.shape == (2, 4, 4, block_channels[-1]), out.shape
    err = jnp.abs(out - ref)
    max_err, mean_err = float(err.max()), float(err.mean())
    # bf16 MXU operands + bf16 inter-layer activations vs the all-f32 reference.
    assert mean_err < 1.5e-2, (max_err, mean_err)
    assert jnp.allclose(out, ref, atol=7.5e-2, rtol=7.5e-2), (max_err, mean_err)
    print("KERNEL_OK")
</pallas_src>

<mosaic_0001>
module attributes {stable_mosaic.version = 11 : i64} {
  func.func @conv_block_kernel(%arg0: i32, %arg1: i32, %arg2: memref<1x8x16x128xf32, #tpu.memory_space<vmem>>, %arg3: memref<1x1x16x128xf32, #tpu.memory_space<vmem>>, %arg4: memref<1x1x16x128xf32, #tpu.memory_space<vmem>>, %arg5: memref<3x3x128xf32, #tpu.memory_space<vmem>>, %arg6: memref<1x128xf32, #tpu.memory_space<vmem>>, %arg7: memref<128x128xbf16, #tpu.memory_space<vmem>>, %arg8: memref<1x128xf32, #tpu.memory_space<vmem>>, %arg9: memref<256x128xbf16, #tpu.memory_space<vmem>>, %arg10: memref<1x128xf32, #tpu.memory_space<vmem>>, %arg11: memref<1x8x16x128xbf16, #tpu.memory_space<vmem>>) attributes {dimension_semantics = [#tpu.dimension_semantics<parallel>, #tpu.dimension_semantics<parallel>], iteration_bounds = array<i64: 2, 2>, scalar_prefetch = 0 : i64, scratch_operands = 0 : i64, tpu.core_type = #tpu.core_type<tc>, window_params = [{transform_indices = @transform_0, window_bounds = array<i64: 1, 8, 16, 128>}, {transform_indices = @transform_1, window_bounds = array<i64: 1, 1, 16, 128>}, {transform_indices = @transform_2, window_bounds = array<i64: 1, 1, 16, 128>}, {pipeline_mode = #tpu.pipeline_mode<synchronous>, transform_indices = @transform_3, window_bounds = array<i64: 3, 3, 128>}, {pipeline_mode = #tpu.pipeline_mode<synchronous>, transform_indices = @transform_4, window_bounds = array<i64: 1, 128>}, {pipeline_mode = #tpu.pipeline_mode<synchronous>, transform_indices = @transform_5, window_bounds = array<i64: 128, 128>}, {pipeline_mode = #tpu.pipeline_mode<synchronous>, transform_indices = @transform_6, window_bounds = array<i64: 1, 128>}, {pipeline_mode = #tpu.pipeline_mode<synchronous>, transform_indices = @transform_7, window_bounds = array<i64: 256, 128>}, {pipeline_mode = #tpu.pipeline_mode<synchronous>, transform_indices = @transform_8, window_bounds = array<i64: 1, 128>}, {transform_indices = @transform_9, window_bounds = array<i64: 1, 8, 16, 128>}]} {
    %c0 = arith.constant 0 : index
    %c0_0 = arith.constant 0 : index
    %c0_1 = arith.constant 0 : index
    %c0_2 = arith.constant 0 : index
    %0 = vector.load %arg2[%c0, %c0_0, %c0_1, %c0_2] : memref<1x8x16x128xf32, #tpu.memory_space<vmem>>, vector<1x8x16x128xf32>
    %1 = vector.shape_cast %0 : vector<1x8x16x128xf32> to vector<8x16x128xf32>
    %c0_3 = arith.constant 0 : index
    %c0_4 = arith.constant 0 : index
    %c0_5 = arith.constant 0 : index
    %c0_6 = arith.constant 0 : index
    %2 = vector.load %arg3[%c0_3, %c0_4, %c0_5, %c0_6] : memref<1x1x16x128xf32, #tpu.memory_space<vmem>>, vector<1x1x16x128xf32>
    %3 = vector.shape_cast %2 : vector<1x1x16x128xf32> to vector<1x16x128xf32>
    %c0_i32 = arith.constant 0 : i32
    %4 = arith.cmpi sgt, %arg1, %c0_i32 : i32
    %5 = arith.extui %4 : i1 to i32
    %6 = arith.sitofp %5 : i32 to f32
    %7 = vector.broadcast %6 : f32 to vector<1x16x128xf32>
    %8 = arith.mulf %3, %7 : vector<1x16x128xf32>
    %c0_7 = arith.constant 0 : index
    %c0_8 = arith.constant 0 : index
    %c0_9 = arith.constant 0 : index
    %c0_10 = arith.constant 0 : index
    %9 = vector.load %arg4[%c0_7, %c0_8, %c0_9, %c0_10] : memref<1x1x16x128xf32, #tpu.memory_space<vmem>>, vector<1x1x16x128xf32>
    %10 = vector.shape_cast %9 : vector<1x1x16x128xf32> to vector<1x16x128xf32>
    %c1_i32 = arith.constant 1 : i32
    %11 = arith.cmpi slt, %arg1, %c1_i32 : i32
    %12 = arith.extui %11 : i1 to i32
    %13 = arith.sitofp %12 : i32 to f32
    %14 = vector.broadcast %13 : f32 to vector<1x16x128xf32>
    %15 = arith.mulf %10, %14 : vector<1x16x128xf32>
    %16 = tpu.concatenate %8, %1, %15 in 0 : vector<1x16x128xf32>, vector<8x16x128xf32>, vector<1x16x128xf32> -> vector<10x16x128xf32>
    %17 = vector.shape_cast %16 : vector<10x16x128xf32> to vector<160x128xf32>
    %18 = tpu.iota {dimensions = array<i32: 1>} : vector<1x16x128xi32>
    %19 = vector.extract_strided_slice %16 {offsets = [0, 0, 0], sizes = [8, 16, 128], strides = [1, 1, 1]} : vector<10x16x128xf32> to vector<8x16x128xf32>
    %c0_11 = arith.constant 0 : index
    %c1 = arith.constant 1 : index
    %c0_12 = arith.constant 0 : index
    %20 = vector.load %arg5[%c0_11, %c1, %c0_12] : memref<3x3x128xf32, #tpu.memory_space<vmem>>, vector<1x1x128xf32>
    %21 = vector.shape_cast %20 : vector<1x1x128xf32> to vector<128xf32>
    %22 = vector.shape_cast %21 : vector<128xf32> to vector<1x1x128xf32>
    %23 = vector.broadcast %22 : vector<1x1x128xf32> to vector<8x16x128xf32>
    %24 = arith.mulf %19, %23 : vector<8x16x128xf32>
    %25 = vector.extract_strided_slice %16 {offsets = [1, 0, 0], sizes = [8, 16, 128], strides = [1, 1, 1]} : vector<10x16x128xf32> to vector<8x16x128xf32>
    %c1_13 = arith.constant 1 : index
    %c1_14 = arith.constant 1 : index
    %c0_15 = arith.constant 0 : index
    %26 = vector.load %arg5[%c1_13, %c1_14, %c0_15] : memref<3x3x128xf32, #tpu.memory_space<vmem>>, vector<1x1x128xf32>
    %27 = vector.shape_cast %26 : vector<1x1x128xf32> to vector<128xf32>
    %28 = vector.shape_cast %27 : vector<128xf32> to vector<1x1x128xf32>
    %29 = vector.broadcast %28 : vector<1x1x128xf32> to vector<8x16x128xf32>
    %30 = arith.mulf %25, %29 : vector<8x16x128xf32>
    %31 = arith.addf %24, %30 : vector<8x16x128xf32>
    %32 = vector.extract_strided_slice %16 {offsets = [2, 0, 0], sizes = [8, 16, 128], strides = [1, 1, 1]} : vector<10x16x128xf32> to vector<8x16x128xf32>
    %c2 = arith.constant 2 : index
    %c1_16 = arith.constant 1 : index
    %c0_17 = arith.constant 0 : index
    %33 = vector.load %arg5[%c2, %c1_16, %c0_17] : memref<3x3x128xf32, #tpu.memory_space<vmem>>, vector<1x1x128xf32>
    %34 = vector.shape_cast %33 : vector<1x1x128xf32> to vector<128xf32>
    %35 = vector.shape_cast %34 : vector<128xf32> to vector<1x1x128xf32>
    %36 = vector.broadcast %35 : vector<1x1x128xf32> to vector<8x16x128xf32>
    %37 = arith.mulf %32, %36 : vector<8x16x128xf32>
    %38 = arith.addf %31, %37 : vector<8x16x128xf32>
    %c1_i32_18 = arith.constant 1 : i32
    %39 = tpu.dynamic_rotate %17 by %c1_i32_18 dim 0 : vector<160x128xf32>, i32 -> vector<160x128xf32>
    %40 = vector.shape_cast %39 : vector<160x128xf32> to vector<10x16x128xf32>
    %c0_i32_19 = arith.constant 0 : i32
    %41 = vector.broadcast %c0_i32_19 : i32 to vector<1x16x128xi32>
    %42 = arith.cmpi sgt, %18, %41 : vector<1x16x128xi32>
    %43 = arith.extui %42 : vector<1x16x128xi1> to vector<1x16x128xi32>
    %44 = arith.sitofp %43 : vector<1x16x128xi32> to vector<1x16x128xf32>
    %45 = vector.broadcast %44 : vector<1x16x128xf32> to vector<10x16x128xf32>
    %46 = arith.mulf %40, %45 : vector<10x16x128xf32>
    %47 = vector.extract_strided_slice %46 {offsets = [0, 0, 0], sizes = [8, 16, 128], strides = [1, 1, 1]} : vector<10x16x128xf32> to vector<8x16x128xf32>
    %c0_20 = arith.constant 0 : index
    %c0_21 = arith.constant 0 : index
    %c0_22 = arith.constant 0 : index
    %48 = vector.load %arg5[%c0_20, %c0_21, %c0_22] : memref<3x3x128xf32, #tpu.memory_space<vmem>>, vector<1x1x128xf32>
    %49 = vector.shape_cast %48 : vector<1x1x128xf32> to vector<128xf32>
    %50 = vector.shape_cast %49 : vector<128xf32> to vector<1x1x128xf32>
    %51 = vector.broadcast %50 : vector<1x1x128xf32> to vector<8x16x128xf32>
    %52 = arith.mulf %47, %51 : vector<8x16x128xf32>
    %53 = arith.addf %38, %52 : vector<8x16x128xf32>
    %54 = vector.extract_strided_slice %46 {offsets = [1, 0, 0], sizes = [8, 16, 128], strides = [1, 1, 1]} : vector<10x16x128xf32> to vector<8x16x128xf32>
    %c1_23 = arith.constant 1 : index
    %c0_24 = arith.constant 0 : index
    %c0_25 = arith.constant 0 : index
    %55 = vector.load %arg5[%c1_23, %c0_24, %c0_25] : memref<3x3x128xf32, #tpu.memory_space<vmem>>, vector<1x1x128xf32>
    %56 = vector.shape_cast %55 : vector<1x1x128xf32> to vector<128xf32>
    %57 = vector.shape_cast %56 : vector<128xf32> to vector<1x1x128xf32>
    %58 = vector.broadcast %57 : vector<1x1x128xf32> to vector<8x16x128xf32>
    %59 = arith.mulf %54, %58 : vector<8x16x128xf32>
    %60 = arith.addf %53, %59 : vector<8x16x128xf32>
    %61 = vector.extract_strided_slice %46 {offsets = [2, 0, 0], sizes = [8, 16, 128], strides = [1, 1, 1]} : vector<10x16x128xf32> to vector<8x16x128xf32>
    %c2_26 = arith.constant 2 : index
    %c0_27 = arith.constant 0 : index
    %c0_28 = arith.constant 0 : index
    %62 = vector.load %arg5[%c2_26, %c0_27, %c0_28] : memref<3x3x128xf32, #tpu.memory_space<vmem>>, vector<1x1x128xf32>
    %63 = vector.shape_cast %62 : vector<1x1x128xf32> to vector<128xf32>
    %64 = vector.shape_cast %63 : vector<128xf32> to vector<1x1x128xf32>
    %65 = vector.broadcast %64 : vector<1x1x128xf32> to vector<8x16x128xf32>
    %66 = arith.mulf %61, %65 : vector<8x16x128xf32>
    %67 = arith.addf %60, %66 : vector<8x16x128xf32>
    %c159_i32 = arith.constant 159 : i32
    %68 = tpu.dynamic_rotate %17 by %c159_i32 dim 0 : vector<160x128xf32>, i32 -> vector<160x128xf32>
    %69 = vector.shape_cast %68 : vector<160x128xf32> to vector<10x16x128xf32>
    %c15_i32 = arith.constant 15 : i32
    %70 = vector.broadcast %c15_i32 : i32 to vector<1x16x128xi32>
    %71 = arith.cmpi slt, %18, %70 : vector<1x16x128xi32>
    %72 = arith.extui %71 : vector<1x16x128xi1> to vector<1x16x128xi32>
    %73 = arith.sitofp %72 : vector<1x16x128xi32> to vector<1x16x128xf32>
    %74 = vector.broadcast %73 : vector<1x16x128xf32> to vector<10x16x128xf32>
    %75 = arith.mulf %69, %74 : vector<10x16x128xf32>
    %76 = vector.extract_strided_slice %75 {offsets = [0, 0, 0], sizes = [8, 16, 128], strides = [1, 1, 1]} : vector<10x16x128xf32> to vector<8x16x128xf32>
    %c0_29 = arith.constant 0 : index
    %c2_30 = arith.constant 2 : index
    %c0_31 = arith.constant 0 : index
    %77 = vector.load %arg5[%c0_29, %c2_30, %c0_31] : memref<3x3x128xf32, #tpu.memory_space<vmem>>, vector<1x1x128xf32>
    %78 = vector.shape_cast %77 : vector<1x1x128xf32> to vector<128xf32>
    %79 = vector.shape_cast %78 : vector<128xf32> to vector<1x1x128xf32>
    %80 = vector.broadcast %79 : vector<1x1x128xf32> to vector<8x16x128xf32>
    %81 = arith.mulf %76, %80 : vector<8x16x128xf32>
    %82 = arith.addf %67, %81 : vector<8x16x128xf32>
    %83 = vector.extract_strided_slice %75 {offsets = [1, 0, 0], sizes = [8, 16, 128], strides = [1, 1, 1]} : vector<10x16x128xf32> to vector<8x16x128xf32>
    %c1_32 = arith.constant 1 : index
    %c2_33 = arith.constant 2 : index
    %c0_34 = arith.constant 0 : index
    %84 = vector.load %arg5[%c1_32, %c2_33, %c0_34] : memref<3x3x128xf32, #tpu.memory_space<vmem>>, vector<1x1x128xf32>
    %85 = vector.shape_cast %84 : vector<1x1x128xf32> to vector<128xf32>
    %86 = vector.shape_cast %85 : vector<128xf32> to vector<1x1x128xf32>
    %87 = vector.broadcast %86 : vector<1x1x128xf32> to vector<8x16x128xf32>
    %88 = arith.mulf %83, %87 : vector<8x16x128xf32>
    %89 = arith.addf %82, %88 : vector<8x16x128xf32>
    %90 = vector.extract_strided_slice %75 {offsets = [2, 0, 0], sizes = [8, 16, 128], strides = [1, 1, 1]} : vector<10x16x128xf32> to vector<8x16x128xf32>
    %c2_35 = arith.constant 2 : index
    %c2_36 = arith.constant 2 : index
    %c0_37 = arith.constant 0 : index
    %91 = vector.load %arg5[%c2_35, %c2_36, %c0_37] : memref<3x3x128xf32, #tpu.memory_space<vmem>>, vector<1x1x128xf32>
    %92 = vector.shape_cast %91 : vector<1x1x128xf32> to vector<128xf32>
    %93 = vector.shape_cast %92 : vector<128xf32> to vector<1x1x128xf32>
    %94 = vector.broadcast %93 : vector<1x1x128xf32> to vector<8x16x128xf32>
    %95 = arith.mulf %90, %94 : vector<8x16x128xf32>
    %96 = arith.addf %89, %95 : vector<8x16x128xf32>
    %c0_38 = arith.constant 0 : index
    %c0_39 = arith.constant 0 : index
    %97 = vector.load %arg6[%c0_38, %c0_39] : memref<1x128xf32, #tpu.memory_space<vmem>>, vector<1x128xf32>
    %98 = vector.shape_cast %97 : vector<1x128xf32> to vector<128xf32>
    %99 = vector.shape_cast %98 : vector<128xf32> to vector<1x1x128xf32>
    %100 = vector.broadcast %99 : vector<1x1x128xf32> to vector<8x16x128xf32>
    %101 = arith.addf %96, %100 : vector<8x16x128xf32>
    %102 = vector.shape_cast %101 : vector<8x16x128xf32> to vector<128x128xf32>
    %cst = arith.constant dense<0.000000e+00> : vector<128xf32>
    %103 = vector.multi_reduction <add>, %102, %cst [1] : vector<128x128xf32> to vector<128xf32>
    %104 = vector.shape_cast %103 : vector<128xf32> to vector<128x1xf32>
    %cst_40 = arith.constant 0.333333343 : f32
    %105 = vector.broadcast %cst_40 : f32 to vector<128x1xf32>
    %106 = arith.mulf %104, %105 : vector<128x1xf32>
    %107 = arith.mulf %102, %102 : vector<128x128xf32>
    %cst_41 = arith.constant dense<0.000000e+00> : vector<128xf32>
    %108 = vector.multi_reduction <add>, %107, %cst_41 [1] : vector<128x128xf32> to vector<128xf32>
    %109 = vector.shape_cast %108 : vector<128xf32> to vector<128x1xf32>
    %cst_42 = arith.constant 0.333333343 : f32
    %110 = vector.broadcast %cst_42 : f32 to vector<128x1xf32>
    %111 = arith.mulf %109, %110 : vector<128x1xf32>
    %112 = arith.mulf %106, %106 : vector<128x1xf32>
    %113 = arith.subf %111, %112 : vector<128x1xf32>
    %114 = vector.broadcast %106 : vector<128x1xf32> to vector<128x128xf32>
    %115 = arith.subf %102, %114 : vector<128x128xf32>
    %cst_43 = arith.constant 0.000000e+00 : f32
    %116 = vector.broadcast %cst_43 : f32 to vector<128x1xf32>
    %117 = arith.maximumf %113, %116 : vector<128x1xf32>
    %cst_44 = arith.constant 9.99999997E-7 : f32
    %118 = vector.broadcast %cst_44 : f32 to vector<128x1xf32>
    %119 = arith.addf %117, %118 : vector<128x1xf32>
    %120 = math.rsqrt %119 : vector<128x1xf32>
    %121 = vector.broadcast %120 : vector<128x1xf32> to vector<128x128xf32>
    %122 = arith.mulf %115, %121 : vector<128x128xf32>
    %123 = arith.truncf %122 : vector<128x128xf32> to vector<128x128xbf16>
    %c0_45 = arith.constant 0 : index
    %c0_46 = arith.constant 0 : index
    %124 = vector.load %arg7[%c0_45, %c0_46] : memref<128x128xbf16, #tpu.memory_space<vmem>>, vector<128x128xbf16>
    %cst_47 = arith.constant dense<0.000000e+00> : vector<128x128xf32>
    %125 = tpu.matmul %123, %124, %cst_47 {dimension_numbers = #tpu.dot_dimension_numbers<[1], [0], [0], [1], [0, 0, 1, 1], [], []>} : vector<128x128xbf16>, vector<128x128xbf16>, vector<128x128xf32> -> vector<128x128xf32>
    %c0_48 = arith.constant 0 : index
    %c0_49 = arith.constant 0 : index
    %126 = vector.load %arg8[%c0_48, %c0_49] : memref<1x128xf32, #tpu.memory_space<vmem>>, vector<1x128xf32>
    %127 = vector.shape_cast %126 : vector<1x128xf32> to vector<128xf32>
    %128 = vector.shape_cast %127 : vector<128xf32> to vector<1x128xf32>
    %129 = vector.broadcast %128 : vector<1x128xf32> to vector<128x128xf32>
    %130 = arith.addf %125, %129 : vector<128x128xf32>
    %cst_50 = arith.constant 5.000000e-01 : f32
    %131 = vector.broadcast %cst_50 : f32 to vector<128x128xf32>
    %132 = arith.mulf %131, %130 : vector<128x128xf32>
    %cst_51 = arith.constant 0.707106769 : f32
    %133 = vector.broadcast %cst_51 : f32 to vector<128x128xf32>
    %134 = arith.mulf %130, %133 : vector<128x128xf32>
    %135 = math.erf %134 : vector<128x128xf32>
    %cst_52 = arith.constant 1.000000e+00 : f32
    %136 = vector.broadcast %cst_52 : f32 to vector<128x128xf32>
    %137 = arith.addf %136, %135 : vector<128x128xf32>
    %138 = arith.mulf %132, %137 : vector<128x128xf32>
    %139 = arith.truncf %138 : vector<128x128xf32> to vector<128x128xbf16>
    %140 = vector.shape_cast %1 : vector<8x16x128xf32> to vector<128x128xf32>
    %141 = arith.truncf %140 : vector<128x128xf32> to vector<128x128xbf16>
    %142 = tpu.concatenate %139, %141 in 1 : vector<128x128xbf16>, vector<128x128xbf16> -> vector<128x256xbf16>
    %c0_53 = arith.constant 0 : index
    %c0_54 = arith.constant 0 : index
    %143 = vector.load %arg9[%c0_53, %c0_54] : memref<256x128xbf16, #tpu.memory_space<vmem>>, vector<256x128xbf16>
    %cst_55 = arith.constant dense<0.000000e+00> : vector<128x128xf32>
    %144 = tpu.matmul %142, %143, %cst_55 {dimension_numbers = #tpu.dot_dimension_numbers<[1], [0], [0], [1], [0, 0, 1, 1], [], []>} : vector<128x256xbf16>, vector<256x128xbf16>, vector<128x128xf32> -> vector<128x128xf32>
    %c0_56 = arith.constant 0 : index
    %c0_57 = arith.constant 0 : index
    %145 = vector.load %arg10[%c0_56, %c0_57] : memref<1x128xf32, #tpu.memory_space<vmem>>, vector<1x128xf32>
    %146 = vector.shape_cast %145 : vector<1x128xf32> to vector<128xf32>
    %147 = vector.shape_cast %146 : vector<128xf32> to vector<1x128xf32>
    %148 = vector.broadcast %147 : vector<1x128xf32> to vector<128x128xf32>
    %149 = arith.addf %144, %148 : vector<128x128xf32>
    %150 = vector.shape_cast %149 : vector<128x128xf32> to vector<8x16x128xf32>
    %151 = arith.truncf %150 : vector<8x16x128xf32> to vector<8x16x128xbf16>
    %c0_58 = arith.constant 0 : index
    %c0_59 = arith.constant 0 : index
    %c0_60 = arith.constant 0 : index
    %c0_61 = arith.constant 0 : index
    %152 = vector.load %arg11[%c0_58, %c0_59, %c0_60, %c0_61] : memref<1x8x16x128xbf16, #tpu.memory_space<vmem>>, vector<1x8x16x128xbf16>
    %153 = vector.shape_cast %152 : vector<1x8x16x128xbf16> to vector<8x16x128xbf16>
    %154 = vector.shape_cast %151 : vector<8x16x128xbf16> to vector<1x8x16x128xbf16>
    tpu.vector_store %arg11[%c0_58, %c0_59, %c0_60, %c0_61], %154 {strides = array<i32>} : memref<1x8x16x128xbf16, #tpu.memory_space<vmem>>, vector<1x8x16x128xbf16>,
    return
  }
  func.func @transform_0(%arg0: i32, %arg1: i32) -> (i32, i32, i32, i32) {
    %c0_i32 = arith.constant 0 : i32
    %c0_i32_0 = arith.constant 0 : i32
    %c0_i32_1 = arith.constant 0 : i32
    return %arg0, %arg1, %c0_i32, %c0_i32_0 : i32, i32, i32, i32
  }
  func.func @transform_1(%arg0: i32, %arg1: i32) -> (i32, i32, i32, i32) {
    %c8_i32 = arith.constant 8 : i32
    %0 = arith.muli %arg1, %c8_i32 : i32
    %c1_i32 = arith.constant 1 : i32
    %1 = arith.subi %0, %c1_i32 : i32
    %c0_i32 = arith.constant 0 : i32
    %2 = arith.maxsi %1, %c0_i32 : i32
    %c0_i32_0 = arith.constant 0 : i32
    %c0_i32_1 = arith.constant 0 : i32
    %c0_i32_2 = arith.constant 0 : i32
    return %arg0, %2, %c0_i32_0, %c0_i32_1 : i32, i32, i32, i32
  }
  func.func @transform_2(%arg0: i32, %arg1: i32) -> (i32, i32, i32, i32) {
    %c8_i32 = arith.constant 8 : i32
    %0 = arith.muli %arg1, %c8_i32 : i32
    %c8_i32_0 = arith.constant 8 : i32
    %1 = arith.addi %0, %c8_i32_0 : i32
    %c15_i32 = arith.constant 15 : i32
    %2 = arith.minsi %1, %c15_i32 : i32
    %c0_i32 = arith.constant 0 : i32
    %c0_i32_1 = arith.constant 0 : i32
    %c0_i32_2 = arith.constant 0 : i32
    return %arg0, %2, %c0_i32, %c0_i32_1 : i32, i32, i32, i32
  }
  func.func @transform_3(%arg0: i32, %arg1: i32) -> (i32, i32, i32) {
    %c0_i32 = arith.constant 0 : i32
    %c0_i32_0 = arith.constant 0 : i32
    %c0_i32_1 = arith.constant 0 : i32
    %c0_i32_2 = arith.constant 0 : i32
    return %c0_i32, %c0_i32_0, %c0_i32_1 : i32, i32, i32
  }
  func.func @transform_4(%arg0: i32, %arg1: i32) -> (i32, i32) {
    %c0_i32 = arith.constant 0 : i32
    %c0_i32_0 = arith.constant 0 : i32
    %c0_i32_1 = arith.constant 0 : i32
    return %c0_i32, %c0_i32_0 : i32, i32
  }
  func.func @transform_5(%arg0: i32, %arg1: i32) -> (i32, i32) {
    %c0_i32 = arith.constant 0 : i32
    %c0_i32_0 = arith.constant 0 : i32
    %c0_i32_1 = arith.constant 0 : i32
    return %c0_i32, %c0_i32_0 : i32, i32
  }
  func.func @transform_6(%arg0: i32, %arg1: i32) -> (i32, i32) {
    %c0_i32 = arith.constant 0 : i32
    %c0_i32_0 = arith.constant 0 : i32
    %c0_i32_1 = arith.constant 0 : i32
    return %c0_i32, %c0_i32_0 : i32, i32
  }
  func.func @transform_7(%arg0: i32, %arg1: i32) -> (i32, i32) {
    %c0_i32 = arith.constant 0 : i32
    %c0_i32_0 = arith.constant 0 : i32
    %c0_i32_1 = arith.constant 0 : i32
    return %c0_i32, %c0_i32_0 : i32, i32
  }
  func.func @transform_8(%arg0: i32, %arg1: i32) -> (i32, i32) {
    %c0_i32 = arith.constant 0 : i32
    %c0_i32_0 = arith.constant 0 : i32
    %c0_i32_1 = arith.constant 0 : i32
    return %c0_i32, %c0_i32_0 : i32, i32
  }
  func.func @transform_9(%arg0: i32, %arg1: i32) -> (i32, i32, i32, i32) {
    %c0_i32 = arith.constant 0 : i32
    %c0_i32_0 = arith.constant 0 : i32
    %c0_i32_1 = arith.constant 0 : i32
    return %arg0, %arg1, %c0_i32, %c0_i32_0 : i32, i32, i32, i32
  }
}

</mosaic_0001>

<llo_original>
// kernel: tpu_custom_call.1
$region0: #{tpu_custom_call.1}
  #allocation0 [shape = 'u32[]', space=smem, size = 0x4, offset = 0x4, fixed_abs, tag = 'smem constant byte address 0x4 - core index']
  #allocation1 [shape = 'u32[144,128]{1,0:T(1,128)}', space=vmem, size = 0x12000, scoped, tag = 'internal scratch']
  %s0 = inlined_call_operand.hbm [shape: f32[2,16,16,128], index: 0, kind: input, shape index: {}]
  %s1 = inlined_call_operand.hbm [shape: f32[2,16,16,128], index: 1, kind: input, shape index: {}]
  %s2 = inlined_call_operand.hbm [shape: f32[2,16,16,128], index: 2, kind: input, shape index: {}]
  %s3 = inlined_call_operand.hbm [shape: f32[3,3,128], index: 3, kind: input, shape index: {}]
  %s4 = inlined_call_operand.vmem [shape: f32[1,128], index: 4, kind: input, shape index: {}]
  %s5 = inlined_call_operand.hbm [shape: bf16[128,128], index: 5, kind: input, shape index: {}]
  %s6 = inlined_call_operand.vmem [shape: f32[1,128], index: 6, kind: input, shape index: {}]
  %s7 = inlined_call_operand.hbm [shape: bf16[256,128], index: 7, kind: input, shape index: {}]
  %s8 = inlined_call_operand.vmem [shape: f32[1,128], index: 8, kind: input, shape index: {}]
  %s9 = inlined_call_operand.hbm [shape: bf16[2,16,16,128], index: 9, kind: output, shape index: {}]
  %s10 = sld [smem:[#allocation0]]
  $region93: #{tpu_custom_call.1} parent=0
    _
  %s12 = ssub.s32 1, %s10
  %s13 = scalar_select 0, %s12, %s10
  $region1: #{tpu_custom_call.1} parent=0
    #allocation2 [shape = 'u8[131072]{0}', space=vmem, size = 0x20000, scoped, tag = 'input window, operand 0']
    #allocation3 [shape = 's32[2]{0}', space=sflag, size = 0x8, scoped, tag = 'scoped memory for tpu_custom_call.1']
    #allocation4 [shape = 's32[2]{0}', space=sflag, size = 0x8, scoped, tag = 'scoped memory for tpu_custom_call.1']
    #allocation5 [shape = 'u8[16384]{0}', space=vmem, size = 0x4000, scoped, tag = 'input window, operand 1']
    #allocation6 [shape = 's32[2]{0}', space=sflag, size = 0x8, scoped, tag = 'scoped memory for tpu_custom_call.1']
    #allocation7 [shape = 'u8[16384]{0}', space=vmem, size = 0x4000, scoped, tag = 'input window, operand 2']
    #allocation8 [shape = 'u8[6144]{0}', space=vmem, size = 0x1800, scoped, tag = 'input window, operand 3, single buffered']
    #allocation9 [shape = 's32[1]{0}', space=sflag, size = 0x4, scoped, tag = 'scoped memory for tpu_custom_call.1']
    #allocation10 [shape = 'u8[32768]{0}', space=vmem, size = 0x8000, scoped, tag = 'input window, operand 5, single buffered']
    #allocation11 [shape = 'u8[65536]{0}', space=vmem, size = 0x10000, scoped, tag = 'input window, operand 7, single buffered']
    #allocation12 [shape = 's32[1]{0}', space=sflag, size = 0x4, scoped, tag = 'scoped memory for tpu_custom_call.1']
    #allocation13 [shape = 'u8[65536]{0}', space=vmem, size = 0x10000, scoped, tag = 'output window, operand 0']
    %14 = vsyncpa [#allocation3], 0
    %s15 = scalar_lea.sflag [#allocation3], 1
    %16 = vsyncpa %s15, 0
    %17 = vsyncpa [#allocation6], 0
    %s18 = scalar_lea.sflag [#allocation6], 1
    %19 = vsyncpa %s18, 0
    %20 = vsyncpa [#allocation9], 0
    %21 = vsyncpa [#allocation12], 0
    %22 = vsyncpa [#allocation4], 0
    %s23 = scalar_lea.sflag [#allocation4], 1
    %24 = vsyncpa %s23, 0
    loop: start=0, step=1, limit=6
    $region2: #{tpu_custom_call.1} parent=1 // loop_pre_header
      _
    $region3: #{tpu_custom_call.1} parent=1 // loop_header
      %s26 = sphi 0, %s30
      %p27 = scmp.ge.s32.totalorder %s26, 6
      %s33 = sphi 0, %s45
      %s34 = sphi 0, %s41
      %s35 = sphi 0, %s33
      %s36 = sphi 0, %s34
      %s37 = sphi 0, %s35
      %s38 = sphi 0, %s36
      %s50 = sphi 0, %s52
      %s53 = sphi 0, %s50
      %s54 = sphi 0, %s53
      %s70 = sphi 0, %s54
      %s86 = sphi 0, %s88
      %s89 = sphi 0, %s86
      %s90 = sphi 0, %s89
      %s106 = sphi 0, %s90
      %s122 = sphi 0, %s124
      %s125 = sphi 0, %s122
      %s126 = sphi 0, %s125
      %s142 = sphi 0, %s126
      %s146 = sphi 0, %s146
      %s148 = sphi 0, %s146
      %s149 = sphi 0, %s148
      %s163 = sphi 0, %s149
      %s167 = sphi 0, %s167
      %s169 = sphi 0, %s167
      %s170 = sphi 0, %s169
      %s184 = sphi 0, %s170
      %s188 = sphi 0, %s188
      %s190 = sphi 0, %s188
      %s191 = sphi 0, %s190
      %s205 = sphi 0, %s191
      %s209 = sphi 0, %s209
      %s211 = sphi 0, %s209
      %s212 = sphi 0, %s211
      %s226 = sphi 0, %s212
      %s230 = sphi 0, %s230
      %s232 = sphi 0, %s230
      %s233 = sphi 0, %s232
      %s247 = sphi 0, %s233
      %s251 = sphi 0, %s251
      %s253 = sphi 0, %s251
      %s254 = sphi 0, %s253
      %s268 = sphi 0, %s254
      %s276 = sphi 0, %s278
      %s279 = sphi 0, %s276
      %s280 = sphi 0, %s279
      %s296 = sphi 0, %s280
    $region4: #{tpu_custom_call.1} parent=1 // loop_header_branch
      %29 = sbr.rel (%p27) target = $region8
    $region5: #{tpu_custom_call.1} parent=1 // loop_body
      %s31 = ssub.s32 %s26, 1
      %s32 = ssub.s32 %s26, 2
      %s39 = sadd.s32 1, %s34
      %p40 = scmp.ge.s32.totalorder %s39, 2
      %s41 = scalar_select %p40, 0, %s39
      %s42 = sadd.s32 1, %s33
      %s43 = scalar_select %p40, %s42, %s33
      %p44 = scmp.ge.s32.totalorder %s43, 2
      %s45 = scalar_select %p44, 0, %s43
      %s46 = ssub.s32 %s33, %s45
      %s47 = ssub.s32 %s34, %s41
      %s48 = sor.u32 %s46, %s47
      %p49 = scmp.eq.s32.totalorder %s48, 0
      %s51 = sadd.s32 %s50, 1
      %s52 = scalar_select %p49, %s50, %s51
      %p55 = pneg %p49
      %p56 = scmp.eq.s32.totalorder %s26, 3
      %p57 = por %p55, %p56
      %p58 = scmp.ne.s32.totalorder %s50, %s53
      %p59 = scmp.eq.s32.totalorder %s26, 0
      %p60 = por %p58, %p59
      %p61 = scmp.ne.s32.totalorder %s50, %s53
      %p62 = scmp.eq.s32.totalorder %s31, 3
      %p63 = por %p61, %p62
      %p64 = scmp.ne.s32.totalorder %s53, %s54
      %p65 = scmp.eq.s32.totalorder %s31, 0
      %p66 = por %p64, %p65
      %p67 = scmp.ne.s32.totalorder %s53, %s54
      %p68 = scmp.eq.s32.totalorder %s32, 3
      %p69 = por %p67, %p68
      %p71 = scmp.ne.s32.totalorder %s54, %s70
      %p72 = scmp.eq.s32.totalorder %s32, 0
      %p73 = por %p71, %p72
      %s74 = smul.u32 %s34, 8
      %s75 = ssub.s32 %s74, 1
      %p76 = scmp.gt.s32.totalorder %s75, 0
      %s77 = scalar_select %p76, %s75, 0
      %s78 = smul.u32 %s41, 8
      %s79 = ssub.s32 %s78, 1
      %p80 = scmp.gt.s32.totalorder %s79, 0
      %s81 = scalar_select %p80, %s79, 0
      %s82 = ssub.s32 %s33, %s45
      %s83 = ssub.s32 %s77, %s81
      %s84 = sor.u32 %s82, %s83
      %p85 = scmp.eq.s32.totalorder %s84, 0
      %s87 = sadd.s32 %s86, 1
      %s88 = scalar_select %p85, %s86, %s87
      %p91 = pneg %p85
      %p92 = scmp.eq.s32.totalorder %s26, 3
      %p93 = por %p91, %p92
      %p94 = scmp.ne.s32.totalorder %s86, %s89
      %p95 = scmp.eq.s32.totalorder %s26, 0
      %p96 = por %p94, %p95
      %p97 = scmp.ne.s32.totalorder %s86, %s89
      %p98 = scmp.eq.s32.totalorder %s31, 3
      %p99 = por %p97, %p98
      %p100 = scmp.ne.s32.totalorder %s89, %s90
      %p101 = scmp.eq.s32.totalorder %s31, 0
      %p102 = por %p100, %p101
      %p103 = scmp.ne.s32.totalorder %s89, %s90
      %p104 = scmp.eq.s32.totalorder %s32, 3
      %p105 = por %p103, %p104
      %p107 = scmp.ne.s32.totalorder %s90, %s106
      %p108 = scmp.eq.s32.totalorder %s32, 0
      %p109 = por %p107, %p108
      %s110 = smul.u32 %s34, 8
      %s111 = sadd.s32 %s110, 8
      %p112 = scmp.lt.s32.totalorder %s111, 15
      %s113 = scalar_select %p112, %s111, 15
      %s114 = smul.u32 %s41, 8
      %s115 = sadd.s32 %s114, 8
      %p116 = scmp.lt.s32.totalorder %s115, 15
      %s117 = scalar_select %p116, %s115, 15
      %s118 = ssub.s32 %s33, %s45
      %s119 = ssub.s32 %s113, %s117
      %s120 = sor.u32 %s118, %s119
      %p121 = scmp.eq.s32.totalorder %s120, 0
      %s123 = sadd.s32 %s122, 1
      %s124 = scalar_select %p121, %s122, %s123
      %p127 = pneg %p121
      %p128 = scmp.eq.s32.totalorder %s26, 3
      %p129 = por %p127, %p128
      %p130 = scmp.ne.s32.totalorder %s122, %s125
      %p131 = scmp.eq.s32.totalorder %s26, 0
      %p132 = por %p130, %p131
      %p133 = scmp.ne.s32.totalorder %s122, %s125
      %p134 = scmp.eq.s32.totalorder %s31, 3
      %p135 = por %p133, %p134
      %p136 = scmp.ne.s32.totalorder %s125, %s126
      %p137 = scmp.eq.s32.totalorder %s31, 0
      %p138 = por %p136, %p137
      %p139 = scmp.ne.s32.totalorder %s125, %s126
      %p140 = scmp.eq.s32.totalorder %s32, 3
      %p141 = por %p139, %p140
      %p143 = scmp.ne.s32.totalorder %s126, %s142
      %p144 = scmp.eq.s32.totalorder %s32, 0
      %p145 = por %p143, %p144
      %s147 = sadd.s32 %s146, 1
      %p150 = scmp.eq.s32.totalorder %s26, 3
      %p151 = scmp.ne.s32.totalorder %s146, %s148
      %p152 = scmp.eq.s32.totalorder %s26, 0
      %p153 = por %p151, %p152
      %p154 = scmp.ne.s32.totalorder %s146, %s148
      %p155 = scmp.eq.s32.totalorder %s31, 3
      %p156 = por %p154, %p155
      %p157 = scmp.ne.s32.totalorder %s148, %s149
      %p158 = scmp.eq.s32.totalorder %s31, 0
      %p159 = por %p157, %p158
      %p160 = scmp.ne.s32.totalorder %s148, %s149
      %p161 = scmp.eq.s32.totalorder %s32, 3
      %p162 = por %p160, %p161
      %p164 = scmp.ne.s32.totalorder %s149, %s163
      %p165 = scmp.eq.s32.totalorder %s32, 0
      %p166 = por %p164, %p165
      %s168 = sadd.s32 %s167, 1
      %p171 = scmp.eq.s32.totalorder %s26, 3
      %p172 = scmp.ne.s32.totalorder %s167, %s169
      %p173 = scmp.eq.s32.totalorder %s26, 0
      %p174 = por %p172, %p173
      %p175 = scmp.ne.s32.totalorder %s167, %s169
      %p176 = scmp.eq.s32.totalorder %s31, 3
      %p177 = por %p175, %p176
      %p178 = scmp.ne.s32.totalorder %s169, %s170
      %p179 = scmp.eq.s32.totalorder %s31, 0
      %p180 = por %p178, %p179
      %p181 = scmp.ne.s32.totalorder %s169, %s170
      %p182 = scmp.eq.s32.totalorder %s32, 3
      %p183 = por %p181, %p182
      %p185 = scmp.ne.s32.totalorder %s170, %s184
      %p186 = scmp.eq.s32.totalorder %s32, 0
      %p187 = por %p185, %p186
      %s189 = sadd.s32 %s188, 1
      %p192 = scmp.eq.s32.totalorder %s26, 3
      %p193 = scmp.ne.s32.totalorder %s188, %s190
      %p194 = scmp.eq.s32.totalorder %s26, 0
      %p195 = por %p193, %p194
      %p196 = scmp.ne.s32.totalorder %s188, %s190
      %p197 = scmp.eq.s32.totalorder %s31, 3
      %p198 = por %p196, %p197
      %p199 = scmp.ne.s32.totalorder %s190, %s191
      %p200 = scmp.eq.s32.totalorder %s31, 0
      %p201 = por %p199, %p200
      %p202 = scmp.ne.s32.totalorder %s190, %s191
      %p203 = scmp.eq.s32.totalorder %s32, 3
      %p204 = por %p202, %p203
      %p206 = scmp.ne.s32.totalorder %s191, %s205
      %p207 = scmp.eq.s32.totalorder %s32, 0
      %p208 = por %p206, %p207
      %s210 = sadd.s32 %s209, 1
      %p213 = scmp.eq.s32.totalorder %s26, 3
      %p214 = scmp.ne.s32.totalorder %s209, %s211
      %p215 = scmp.eq.s32.totalorder %s26, 0
      %p216 = por %p214, %p215
      %p217 = scmp.ne.s32.totalorder %s209, %s211
      %p218 = scmp.eq.s32.totalorder %s31, 3
      %p219 = por %p217, %p218
      %p220 = scmp.ne.s32.totalorder %s211, %s212
      %p221 = scmp.eq.s32.totalorder %s31, 0
      %p222 = por %p220, %p221
      %p223 = scmp.ne.s32.totalorder %s211, %s212
      %p224 = scmp.eq.s32.totalorder %s32, 3
      %p225 = por %p223, %p224
      %p227 = scmp.ne.s32.totalorder %s212, %s226
      %p228 = scmp.eq.s32.totalorder %s32, 0
      %p229 = por %p227, %p228
      %s231 = sadd.s32 %s230, 1
      %p234 = scmp.eq.s32.totalorder %s26, 3
      %p235 = scmp.ne.s32.totalorder %s230, %s232
      %p236 = scmp.eq.s32.totalorder %s26, 0
      %p237 = por %p235, %p236
      %p238 = scmp.ne.s32.totalorder %s230, %s232
      %p239 = scmp.eq.s32.totalorder %s31, 3
      %p240 = por %p238, %p239
      %p241 = scmp.ne.s32.totalorder %s232, %s233
      %p242 = scmp.eq.s32.totalorder %s31, 0
      %p243 = por %p241, %p242
      %p244 = scmp.ne.s32.totalorder %s232, %s233
      %p245 = scmp.eq.s32.totalorder %s32, 3
      %p246 = por %p244, %p245
      %p248 = scmp.ne.s32.totalorder %s233, %s247
      %p249 = scmp.eq.s32.totalorder %s32, 0
      %p250 = por %p248, %p249
      %s252 = sadd.s32 %s251, 1
      %p255 = scmp.eq.s32.totalorder %s26, 3
      %p256 = scmp.ne.s32.totalorder %s251, %s253
      %p257 = scmp.eq.s32.totalorder %s26, 0
      %p258 = por %p256, %p257
      %p259 = scmp.ne.s32.totalorder %s251, %s253
      %p260 = scmp.eq.s32.totalorder %s31, 3
      %p261 = por %p259, %p260
      %p262 = scmp.ne.s32.totalorder %s253, %s254
      %p263 = scmp.eq.s32.totalorder %s31, 0
      %p264 = por %p262, %p263
      %p265 = scmp.ne.s32.totalorder %s253, %s254
      %p266 = scmp.eq.s32.totalorder %s32, 3
      %p267 = por %p265, %p266
      %p269 = scmp.ne.s32.totalorder %s254, %s268
      %p270 = scmp.eq.s32.totalorder %s32, 0
      %p271 = por %p269, %p270
      %s272 = ssub.s32 %s33, %s45
      %s273 = ssub.s32 %s34, %s41
      %s274 = sor.u32 %s272, %s273
      %p275 = scmp.eq.s32.totalorder %s274, 0
      %s277 = sadd.s32 %s276, 1
      %s278 = scalar_select %p275, %s276, %s277
      %p281 = pneg %p275
      %p282 = scmp.eq.s32.totalorder %s26, 3
      %p283 = por %p281, %p282
      %p284 = scmp.ne.s32.totalorder %s276, %s279
      %p285 = scmp.eq.s32.totalorder %s26, 0
      %p286 = por %p284, %p285
      %p287 = scmp.ne.s32.totalorder %s276, %s279
      %p288 = scmp.eq.s32.totalorder %s31, 3
      %p289 = por %p287, %p288
      %p290 = scmp.ne.s32.totalorder %s279, %s280
      %p291 = scmp.eq.s32.totalorder %s31, 0
      %p292 = por %p290, %p291
      %p293 = scmp.ne.s32.totalorder %s279, %s280
      %p294 = scmp.eq.s32.totalorder %s32, 3
      %p295 = por %p293, %p294
      %p297 = scmp.ne.s32.totalorder %s280, %s296
      %p298 = scmp.eq.s32.totalorder %s32, 0
      %p299 = por %p297, %p298
      %p300 = scmp.le.s32.totalorder 1, %s26
      %p301 = scmp.lt.s32.totalorder %s26, 5
      %p302 = pnand %p300, %p301
      %p303 = pneg %p302
      // Predicated region
      $region9: #{tpu_custom_call.1} parent=5 // pred_check
        _
      $region10: #{tpu_custom_call.1} parent=5 // pred_check_branch
        %305 = sbr.rel (%p302) target = $region12
      $region11: #{tpu_custom_call.1} parent=5 // pred_region
        %s306 = ssub.s32 %s26, 1
        // Predicated region
        $region13: #{tpu_custom_call.1} parent=11 // pred_check
          %p307 = pneg %p159
        $region14: #{tpu_custom_call.1} parent=11 // pred_check_branch
          %309 = sbr.rel (%p307) target = $region16
        $region15: #{tpu_custom_call.1} parent=11 // pred_region
          %s311 = ssub.s32 192, 192
          %312 = vsyncadd [#allocation9], %s311
          %s313 = sshll.u32 [#allocation8], 4
          %s314 = int_to_ptr.vmem [resolvable:$true] %s313
          %319 = dma.hbm_to_vmem [thread:$0]  %s3, 192, %s314, [#allocation9], 64, 64, 4
        $region16: #{tpu_custom_call.1} parent=11 // pred_fallthru
          _
        // Predicated region
        $region17: #{tpu_custom_call.1} parent=11 // pred_check
          %p320 = pneg %p180
        $region18: #{tpu_custom_call.1} parent=11 // pred_check_branch
          %322 = sbr.rel (%p320) target = $region20
        $region19: #{tpu_custom_call.1} parent=11 // pred_region
          _
        $region20: #{tpu_custom_call.1} parent=11 // pred_fallthru
          _
        // Predicated region
        $region21: #{tpu_custom_call.1} parent=11 // pred_check
          %p323 = pneg %p201
        $region22: #{tpu_custom_call.1} parent=11 // pred_check_branch
          %325 = sbr.rel (%p323) target = $region24
        $region23: #{tpu_custom_call.1} parent=11 // pred_region
          %s327 = ssub.s32 1024, 1024
          %328 = vsyncadd [#allocation9], %s327
          %s329 = sshll.u32 [#allocation10], 4
          %s330 = int_to_ptr.vmem [resolvable:$true] %s329
          %335 = dma.hbm_to_vmem [thread:$0]  %s5, 1024, %s330, [#allocation9], 64, 64, 4
        $region24: #{tpu_custom_call.1} parent=11 // pred_fallthru
          _
        // Predicated region
        $region25: #{tpu_custom_call.1} parent=11 // pred_check
          %p336 = pneg %p222
        $region26: #{tpu_custom_call.1} parent=11 // pred_check_branch
          %338 = sbr.rel (%p336) target = $region28
        $region27: #{tpu_custom_call.1} parent=11 // pred_region
          _
        $region28: #{tpu_custom_call.1} parent=11 // pred_fallthru
          _
        // Predicated region
        $region29: #{tpu_custom_call.1} parent=11 // pred_check
          %p339 = pneg %p243
        $region30: #{tpu_custom_call.1} parent=11 // pred_check_branch
          %341 = sbr.rel (%p339) target = $region32
        $region31: #{tpu_custom_call.1} parent=11 // pred_region
          %s343 = ssub.s32 2048, 2048
          %344 = vsyncadd [#allocation12], %s343
          %s345 = sshll.u32 [#allocation11], 4
          %s346 = int_to_ptr.vmem [resolvable:$true] %s345
          %351 = dma.hbm_to_vmem [thread:$0]  %s7, 2048, %s346, [#allocation12], 64, 64, 4
        $region32: #{tpu_custom_call.1} parent=11 // pred_fallthru
          _
        // Predicated region
        $region33: #{tpu_custom_call.1} parent=11 // pred_check
          %p352 = pneg %p264
        $region34: #{tpu_custom_call.1} parent=11 // pred_check_branch
          %354 = sbr.rel (%p352) target = $region36
        $region35: #{tpu_custom_call.1} parent=11 // pred_region
          _
        $region36: #{tpu_custom_call.1} parent=11 // pred_fallthru
          _
      $region12: #{tpu_custom_call.1} parent=5 // pred_fallthru
        _
      %p355 = scmp.lt.s32.totalorder %s26, 4
      // Predicated region
      $region37: #{tpu_custom_call.1} parent=5 // pred_check
        %p356 = pneg %p355
      $region38: #{tpu_custom_call.1} parent=5 // pred_check_branch
        %358 = sbr.rel (%p356) target = $region40
      $region39: #{tpu_custom_call.1} parent=5 // pred_region
        // Predicated region
        $region41: #{tpu_custom_call.1} parent=39 // pred_check
          %p359 = pneg %p60
        $region42: #{tpu_custom_call.1} parent=39 // pred_check_branch
          %361 = sbr.rel (%p359) target = $region44
        $region43: #{tpu_custom_call.1} parent=39 // pred_region
          %s362 = sand.u32 %s50, 1
          %s363 = scalar_lea.sflag [#allocation3], %s362
          %s364 = sand.u32 %s50, 1
          %s365 = smul.addr %s364, 128
          %s366 = scalar_lea.vmem [#allocation2], %s365
          %s367 = smul.u32 8, %s34
          %s369 = ssub.s32 2048, 2048
          %370 = vsyncadd %s363, %s369
          %s371 = smul.addr %s367, 2
          %s372 = smul.addr %s33, 32
          %s373 = sadd.s32 %s371, %s372
          %s374 = smul.addr %s373, 128
          %s375 = scalar_lea.hbm %s0, %s374
          %s376 = sshll.u32 %s366, 4
          %s377 = int_to_ptr.vmem [resolvable:$true] %s376
          %382 = dma.hbm_to_vmem [thread:$0]  %s375, 2048, %s377, %s363, 128, 128, 8
        $region44: #{tpu_custom_call.1} parent=39 // pred_fallthru
          _
        // Predicated region
        $region45: #{tpu_custom_call.1} parent=39 // pred_check
          %p383 = pneg %p96
        $region46: #{tpu_custom_call.1} parent=39 // pred_check_branch
          %385 = sbr.rel (%p383) target = $region48
        $region47: #{tpu_custom_call.1} parent=39 // pred_region
          %s386 = sand.u32 %s26, 1
          %s387 = scalar_lea.sflag [#allocation6], %s386
          %s388 = sand.u32 %s86, 1
          %s389 = smul.addr %s388, 16
          %s390 = scalar_lea.vmem [#allocation5], %s389
          %s391 = smul.u32 %s34, 8
          %s392 = ssub.s32 %s391, 1
          %p393 = scmp.gt.s32.totalorder %s392, 0
          %s394 = scalar_select %p393, %s392, 0
          %s396 = ssub.s32 256, 256
          %397 = vsyncadd %s387, %s396
          %s398 = smul.addr %s394, 2
          %s399 = smul.addr %s33, 32
          %s400 = sadd.s32 %s398, %s399
          %s401 = smul.addr %s400, 128
          %s402 = scalar_lea.hbm %s1, %s401
          %s403 = sshll.u32 %s390, 4
          %s404 = int_to_ptr.vmem [resolvable:$true] %s403
          %409 = dma.hbm_to_vmem [thread:$0]  %s402, 256, %s404, %s387, 128, 128, 8
        $region48: #{tpu_custom_call.1} parent=39 // pred_fallthru
          _
        // Predicated region
        $region49: #{tpu_custom_call.1} parent=39 // pred_check
          %p410 = pneg %p132
        $region50: #{tpu_custom_call.1} parent=39 // pred_check_branch
          %412 = sbr.rel (%p410) target = $region52
        $region51: #{tpu_custom_call.1} parent=39 // pred_region
          %s413 = sand.u32 %s26, 1
          %s414 = scalar_lea.sflag [#allocation6], %s413
          %s415 = sand.u32 %s122, 1
          %s416 = smul.addr %s415, 16
          %s417 = scalar_lea.vmem [#allocation7], %s416
          %s418 = smul.u32 %s34, 8
          %s419 = sadd.s32 %s418, 8
          %p420 = scmp.lt.s32.totalorder %s419, 15
          %s421 = scalar_select %p420, %s419, 15
          %s423 = ssub.s32 256, 256
          %424 = vsyncadd %s414, %s423
          %s425 = smul.addr %s421, 2
          %s426 = smul.addr %s33, 32
          %s427 = sadd.s32 %s425, %s426
          %s428 = smul.addr %s427, 128
          %s429 = scalar_lea.hbm %s2, %s428
          %s430 = sshll.u32 %s417, 4
          %s431 = int_to_ptr.vmem [resolvable:$true] %s430
          %436 = dma.hbm_to_vmem [thread:$0]  %s429, 256, %s431, %s414, 128, 128, 8
        $region52: #{tpu_custom_call.1} parent=39 // pred_fallthru
          _
      $region40: #{tpu_custom_call.1} parent=5 // pred_fallthru
        _
      %p437 = scmp.le.s32.totalorder 1, %s26
      %p438 = scmp.lt.s32.totalorder %s26, 5
      %p439 = pnand %p437, %p438
      %p440 = pneg %p439
      // Predicated region
      $region53: #{tpu_custom_call.1} parent=5 // pred_check
        _
      $region54: #{tpu_custom_call.1} parent=5 // pred_check_branch
        %442 = sbr.rel (%p439) target = $region56
      $region55: #{tpu_custom_call.1} parent=5 // pred_region
        %s443 = ssub.s32 %s26, 1
        %s444 = sand.u32 %s53, 1
        %s445 = scalar_lea.sflag [#allocation3], %s444
        %s446 = sand.u32 %s53, 1
        %s447 = smul.addr %s446, 128
        %s448 = scalar_lea.vmem [#allocation2], %s447
        // Predicated region
        $region57: #{tpu_custom_call.1} parent=55 // pred_check
          %p449 = pneg %p66
        $region58: #{tpu_custom_call.1} parent=55 // pred_check_branch
          %451 = sbr.rel (%p449) target = $region60
        $region59: #{tpu_custom_call.1} parent=55 // pred_region
          %452 = dma.done %s445, 2048
        $region60: #{tpu_custom_call.1} parent=55 // pred_fallthru
          _
        %s453 = sand.u32 %s31, 1
        %s454 = scalar_lea.sflag [#allocation6], %s453
        %s455 = sand.u32 %s89, 1
        %s456 = smul.addr %s455, 16
        %s457 = scalar_lea.vmem [#allocation5], %s456
        // Predicated region
        $region61: #{tpu_custom_call.1} parent=55 // pred_check
          %p458 = pneg %p102
        $region62: #{tpu_custom_call.1} parent=55 // pred_check_branch
          %460 = sbr.rel (%p458) target = $region64
        $region63: #{tpu_custom_call.1} parent=55 // pred_region
          %461 = dma.done %s454, 256
        $region64: #{tpu_custom_call.1} parent=55 // pred_fallthru
          _
        %s462 = sand.u32 %s31, 1
        %s463 = scalar_lea.sflag [#allocation6], %s462
        %s464 = sand.u32 %s125, 1
        %s465 = smul.addr %s464, 16
        %s466 = scalar_lea.vmem [#allocation7], %s465
        // Predicated region
        $region65: #{tpu_custom_call.1} parent=55 // pred_check
          %p467 = pneg %p138
        $region66: #{tpu_custom_call.1} parent=55 // pred_check_branch
          %469 = sbr.rel (%p467) target = $region68
        $region67: #{tpu_custom_call.1} parent=55 // pred_region
          %470 = dma.done %s463, 256
        $region68: #{tpu_custom_call.1} parent=55 // pred_fallthru
          _
        // Predicated region
        $region69: #{tpu_custom_call.1} parent=55 // pred_check
          %p471 = pneg %p159
        $region70: #{tpu_custom_call.1} parent=55 // pred_check_branch
          %473 = sbr.rel (%p471) target = $region72
        $region71: #{tpu_custom_call.1} parent=55 // pred_region
          %474 = dma.done [#allocation9], 192
        $region72: #{tpu_custom_call.1} parent=55 // pred_fallthru
          _
        // Predicated region
        $region73: #{tpu_custom_call.1} parent=55 // pred_check
          %p475 = pneg %p201
        $region74: #{tpu_custom_call.1} parent=55 // pred_check_branch
          %477 = sbr.rel (%p475) target = $region76
        $region75: #{tpu_custom_call.1} parent=55 // pred_region
          %478 = dma.done [#allocation9], 1024
        $region76: #{tpu_custom_call.1} parent=55 // pred_fallthru
          _
        // Predicated region
        $region77: #{tpu_custom_call.1} parent=55 // pred_check
          %p479 = pneg %p243
        $region78: #{tpu_custom_call.1} parent=55 // pred_check_branch
          %481 = sbr.rel (%p479) target = $region80
        $region79: #{tpu_custom_call.1} parent=55 // pred_region
          %482 = dma.done [#allocation12], 2048
        $region80: #{tpu_custom_call.1} parent=55 // pred_fallthru
          _
        %s483 = sand.u32 %s53, 1
        %s484 = scalar_lea.sflag [#allocation3], %s483
        %s485 = sand.u32 %s53, 1
        %s486 = smul.addr %s485, 128
        %s487 = scalar_lea.vmem [#allocation2], %s486
        %p488 = pneg %p66
        %p489 = pneg %p63
        %s490 = sand.u32 %s31, 1
        %s491 = scalar_lea.sflag [#allocation6], %s490
        %s492 = sand.u32 %s89, 1
        %s493 = smul.addr %s492, 16
        %s494 = scalar_lea.vmem [#allocation5], %s493
        %p495 = pneg %p102
        %p496 = pneg %p99
        %s497 = sand.u32 %s31, 1
        %s498 = scalar_lea.sflag [#allocation6], %s497
        %s499 = sand.u32 %s125, 1
        %s500 = smul.addr %s499, 16
        %s501 = scalar_lea.vmem [#allocation7], %s500
        %p502 = pneg %p138
        %p503 = pneg %p135
        %p504 = pneg %p159
        %p505 = pneg %p156
        %p506 = pneg %p180
        %p507 = pneg %p177
        %p508 = pneg %p201
        %p509 = pneg %p198
        %p510 = pneg %p222
        %p511 = pneg %p219
        %p512 = pneg %p243
        %p513 = pneg %p240
        %p514 = pneg %p264
        %p515 = pneg %p261
        %p516 = pneg %p292
        %p517 = pneg %p289
        %s518 = sand.u32 %s279, 1
        %s519 = scalar_lea.sflag [#allocation4], %s518
        %s520 = sand.u32 %s279, 1
        %s521 = smul.addr %s520, 64
        %s522 = scalar_lea.vmem [#allocation13], %s521
        %s523 = smul.u32 8, %s36
        %s524 = smul.u32 %s36, 8
        %s525 = ssub.s32 %s524, 1
        %p526 = scmp.gt.s32.totalorder %s525, 0
        %s527 = scalar_select %p526, %s525, 0
        %s528 = smul.u32 %s36, 8
        %s529 = sadd.s32 %s528, 8
        %p530 = scmp.lt.s32.totalorder %s529, 15
        %s531 = scalar_select %p530, %s529, 15
        %s532 = smul.u32 8, %s36
        %v534 = vld [vmem:[%s448] sm:$0xff]
        %v535 = vld [vmem:[%s448 + $0x8] sm:$0xff]
        %v536 = vld [vmem:[%s448 + $0x10] sm:$0xff]
        %v537 = vld [vmem:[%s448 + $0x18] sm:$0xff]
        %v538 = vld [vmem:[%s448 + $0x20] sm:$0xff]
        %v539 = vld [vmem:[%s448 + $0x28] sm:$0xff]
        %v540 = vld [vmem:[%s448 + $0x30] sm:$0xff]
        %v541 = vld [vmem:[%s448 + $0x38] sm:$0xff]
        %v542 = vld [vmem:[%s448 + $0x40] sm:$0xff]
        %v543 = vld [vmem:[%s448 + $0x48] sm:$0xff]
        %v544 = vld [vmem:[%s448 + $0x50] sm:$0xff]
        %v545 = vld [vmem:[%s448 + $0x58] sm:$0xff]
        %v546 = vld [vmem:[%s448 + $0x60] sm:$0xff]
        %v547 = vld [vmem:[%s448 + $0x68] sm:$0xff]
        %v548 = vld [vmem:[%s448 + $0x70] sm:$0xff]
        %v549 = vld [vmem:[%s448 + $0x78] sm:$0xff]
        %v550 = vld [vmem:[%s457] sm:$0xff]
        %v551 = vld [vmem:[%s457 + $0x8] sm:$0xff]
        %p552 = scmp.gt.s32.totalorder %s36, 0
        %s553 = scalar_select %p552, 1, 0
        %s554 = scvt.s32.f32 %s553
        %v555 = vstv %s554
        %v556 = vmul.f32 %v550, %v555
        %v557 = vmul.f32 %v551, %v555
        %v558 = vld [vmem:[%s466] sm:$0xff]
        %v559 = vld [vmem:[%s466 + $0x8] sm:$0xff]
        %p560 = scmp.lt.s32.totalorder %s36, 1
        %s561 = scalar_select %p560, 1, 0
        %s562 = scvt.s32.f32 %s561
        %v563 = vstv %s562
        %v564 = vmul.f32 %v558, %v563
        %v565 = vmul.f32 %v559, %v563
        %v566 = vlaneseq
        %v567 = vshrl.u32 %v566, 7
        %v568 = vadd.s32 %v567, 8
        %v569 = vld [vmem:[#allocation8 + $0x1] sm:$0x1]
        %v570 = vlaneseq
        %v571 = vshrl.u32 %v570, 7
        %v572 = vsub.s32 0, %v571
        %v573 = vrot.slane %v569, %v572
        %v574 = vmul.f32 %v556, %v573
        %v575 = vmul.f32 %v557, %v573
        %v576 = vmul.f32 %v534, %v573
        %v577 = vmul.f32 %v535, %v573
        %v578 = vmul.f32 %v536, %v573
        %v579 = vmul.f32 %v537, %v573
        %v580 = vmul.f32 %v538, %v573
        %v581 = vmul.f32 %v539, %v573
        %v582 = vmul.f32 %v540, %v573
        %v583 = vmul.f32 %v541, %v573
        %v584 = vmul.f32 %v542, %v573
        %v585 = vmul.f32 %v543, %v573
        %v586 = vmul.f32 %v544, %v573
        %v587 = vmul.f32 %v545, %v573
        %v588 = vmul.f32 %v546, %v573
        %v589 = vmul.f32 %v547, %v573
        %s590 = scalar_lea.vmem [#allocation8], 4
        %v591 = vld [vmem:[%s590 + $0x1] sm:$0x1]
        %v592 = vlaneseq
        %v593 = vshrl.u32 %v592, 7
        %v594 = vsub.s32 0, %v593
        %v595 = vrot.slane %v591, %v594
        %v596 = vmul.f32 %v534, %v595
        %v597 = vmul.f32 %v535, %v595
        %v598 = vmul.f32 %v536, %v595
        %v599 = vmul.f32 %v537, %v595
        %v600 = vmul.f32 %v538, %v595
        %v601 = vmul.f32 %v539, %v595
        %v602 = vmul.f32 %v540, %v595
        %v603 = vmul.f32 %v541, %v595
        %v604 = vmul.f32 %v542, %v595
        %v605 = vmul.f32 %v543, %v595
        %v606 = vmul.f32 %v544, %v595
        %v607 = vmul.f32 %v545, %v595
        %v608 = vmul.f32 %v546, %v595
        %v609 = vmul.f32 %v547, %v595
        %v610 = vmul.f32 %v548, %v595
        %v611 = vmul.f32 %v549, %v595
        %v612 = vadd.f32 %v574, %v596
        %v613 = vadd.f32 %v575, %v597
        %v614 = vadd.f32 %v576, %v598
        %v615 = vadd.f32 %v577, %v599
        %v616 = vadd.f32 %v578, %v600
        %v617 = vadd.f32 %v579, %v601
        %v618 = vadd.f32 %v580, %v602
        %v619 = vadd.f32 %v581, %v603
        %v620 = vadd.f32 %v582, %v604
        %v621 = vadd.f32 %v583, %v605
        %v622 = vadd.f32 %v584, %v606
        %v623 = vadd.f32 %v585, %v607
        %v624 = vadd.f32 %v586, %v608
        %v625 = vadd.f32 %v587, %v609
        %v626 = vadd.f32 %v588, %v610
        %v627 = vadd.f32 %v589, %v611
        %s628 = scalar_lea.vmem [#allocation8], 8
        %v629 = vld [vmem:[%s628 + $0x1] sm:$0x1]
        %v630 = vlaneseq
        %v631 = vshrl.u32 %v630, 7
        %v632 = vsub.s32 0, %v631
        %v633 = vrot.slane %v629, %v632
        %v634 = vmul.f32 %v536, %v633
        %v635 = vmul.f32 %v537, %v633
        %v636 = vmul.f32 %v538, %v633
        %v637 = vmul.f32 %v539, %v633
        %v638 = vmul.f32 %v540, %v633
        %v639 = vmul.f32 %v541, %v633
        %v640 = vmul.f32 %v542, %v633
        %v641 = vmul.f32 %v543, %v633
        %v642 = vmul.f32 %v544, %v633
        %v643 = vmul.f32 %v545, %v633
        %v644 = vmul.f32 %v546, %v633
        %v645 = vmul.f32 %v547, %v633
        %v646 = vmul.f32 %v548, %v633
        %v647 = vmul.f32 %v549, %v633
        %v648 = vmul.f32 %v564, %v633
        %v649 = vmul.f32 %v565, %v633
        %v650 = vadd.f32 %v612, %v634
        %v651 = vadd.f32 %v613, %v635
        %v652 = vadd.f32 %v614, %v636
        %v653 = vadd.f32 %v615, %v637
        %v654 = vadd.f32 %v616, %v638
        %v655 = vadd.f32 %v617, %v639
        %v656 = vadd.f32 %v618, %v640
        %v657 = vadd.f32 %v619, %v641
        %v658 = vadd.f32 %v620, %v642
        %v659 = vadd.f32 %v621, %v643
        %v660 = vadd.f32 %v622, %v644
        %v661 = vadd.f32 %v623, %v645
        %v662 = vadd.f32 %v624, %v646
        %v663 = vadd.f32 %v625, %v647
        %v664 = vadd.f32 %v626, %v648
        %v665 = vadd.f32 %v627, %v649
        %v666 = vrot.slane %v556, 7
        %v667 = vrot.slane %v557, 7
        %v668 = vrot.slane %v534, 7
        %v669 = vrot.slane %v535, 7
        %v670 = vrot.slane %v536, 7
        %v671 = vrot.slane %v537, 7
        %v672 = vrot.slane %v538, 7
        %v673 = vrot.slane %v539, 7
        %v674 = vrot.slane %v540, 7
        %v675 = vrot.slane %v541, 7
        %v676 = vrot.slane %v542, 7
        %v677 = vrot.slane %v543, 7
        %v678 = vrot.slane %v544, 7
        %v679 = vrot.slane %v545, 7
        %v680 = vrot.slane %v546, 7
        %v681 = vrot.slane %v547, 7
        %v682 = vrot.slane %v548, 7
        %v683 = vrot.slane %v549, 7
        %v684 = vrot.slane %v564, 7
        %v685 = vrot.slane %v565, 7
        %vm686 = vcmp.lt.s32.totalorder %v567, 1
        %v687 = vsel %vm686, %v684, %v685
        %v688 = vsel %vm686, %v683, %v684
        %v689 = vsel %vm686, %v682, %v683
        %v690 = vsel %vm686, %v681, %v682
        %v691 = vsel %vm686, %v680, %v681
        %v692 = vsel %vm686, %v679, %v680
        %v693 = vsel %vm686, %v678, %v679
        %v694 = vsel %vm686, %v677, %v678
        %v695 = vsel %vm686, %v676, %v677
        %v696 = vsel %vm686, %v675, %v676
        %v697 = vsel %vm686, %v674, %v675
        %v698 = vsel %vm686, %v673, %v674
        %v699 = vsel %vm686, %v672, %v673
        %v700 = vsel %vm686, %v671, %v672
        %v701 = vsel %vm686, %v670, %v671
        %v702 = vsel %vm686, %v669, %v670
        %v703 = vsel %vm686, %v668, %v669
        %v704 = vsel %vm686, %v667, %v668
        %v705 = vsel %vm686, %v666, %v667
        %v706 = vsel %vm686, %v685, %v666
        %vm707 = vcmp.gt.s32.totalorder %v567, 0
        %vm708 = vcmp.gt.s32.totalorder %v568, 0
        %v709 = vsel %vm707, 1, 0
        %v710 = vsel %vm708, 1, 0
        %v711 = vcvt.s32.f32 %v709
        %v712 = vcvt.s32.f32 %v710
        %v713 = vmul.f32 %v706, %v711
        %v714 = vmul.f32 %v705, %v712
        %v715 = vmul.f32 %v704, %v711
        %v716 = vmul.f32 %v703, %v712
        %v717 = vmul.f32 %v702, %v711
        %v718 = vmul.f32 %v701, %v712
        %v719 = vmul.f32 %v700, %v711
        %v720 = vmul.f32 %v699, %v712
        %v721 = vmul.f32 %v698, %v711
        %v722 = vmul.f32 %v697, %v712
        %v723 = vmul.f32 %v696, %v711
        %v724 = vmul.f32 %v695, %v712
        %v725 = vmul.f32 %v694, %v711
        %v726 = vmul.f32 %v693, %v712
        %v727 = vmul.f32 %v692, %v711
        %v728 = vmul.f32 %v691, %v712
        %v729 = vmul.f32 %v690, %v711
        %v730 = vmul.f32 %v689, %v712
        %v731 = vmul.f32 %v688, %v711
        %v732 = vmul.f32 %v687, %v712
        %v733 = vld [vmem:[#allocation8] sm:$0x1]
        %v734 = vlaneseq
        %v735 = vshrl.u32 %v734, 7
        %v736 = vsub.s32 0, %v735
        %v737 = vrot.slane %v733, %v736
        %v738 = vmul.f32 %v713, %v737
        %v739 = vmul.f32 %v714, %v737
        %v740 = vmul.f32 %v715, %v737
        %v741 = vmul.f32 %v716, %v737
        %v742 = vmul.f32 %v717, %v737
        %v743 = vmul.f32 %v718, %v737
        %v744 = vmul.f32 %v719, %v737
        %v745 = vmul.f32 %v720, %v737
        %v746 = vmul.f32 %v721, %v737
        %v747 = vmul.f32 %v722, %v737
        %v748 = vmul.f32 %v723, %v737
        %v749 = vmul.f32 %v724, %v737
        %v750 = vmul.f32 %v725, %v737
        %v751 = vmul.f32 %v726, %v737
        %v752 = vmul.f32 %v727, %v737
        %v753 = vmul.f32 %v728, %v737
        %v754 = vadd.f32 %v650, %v738
        %v755 = vadd.f32 %v651, %v739
        %v756 = vadd.f32 %v652, %v740
        %v757 = vadd.f32 %v653, %v741
        %v758 = vadd.f32 %v654, %v742
        %v759 = vadd.f32 %v655, %v743
        %v760 = vadd.f32 %v656, %v744
        %v761 = vadd.f32 %v657, %v745
        %v762 = vadd.f32 %v658, %v746
        %v763 = vadd.f32 %v659, %v747
        %v764 = vadd.f32 %v660, %v748
        %v765 = vadd.f32 %v661, %v749
        %v766 = vadd.f32 %v662, %v750
        %v767 = vadd.f32 %v663, %v751
        %v768 = vadd.f32 %v664, %v752
        %v769 = vadd.f32 %v665, %v753
        %v770 = vld [vmem:[%s590] sm:$0x1]
        %v771 = vlaneseq
        %v772 = vshrl.u32 %v771, 7
        %v773 = vsub.s32 0, %v772
        %v774 = vrot.slane %v770, %v773
        %v775 = vmul.f32 %v715, %v774
        %v776 = vmul.f32 %v716, %v774
        %v777 = vmul.f32 %v717, %v774
        %v778 = vmul.f32 %v718, %v774
        %v779 = vmul.f32 %v719, %v774
        %v780 = vmul.f32 %v720, %v774
        %v781 = vmul.f32 %v721, %v774
        %v782 = vmul.f32 %v722, %v774
        %v783 = vmul.f32 %v723, %v774
        %v784 = vmul.f32 %v724, %v774
        %v785 = vmul.f32 %v725, %v774
        %v786 = vmul.f32 %v726, %v774
        %v787 = vmul.f32 %v727, %v774
        %v788 = vmul.f32 %v728, %v774
        %v789 = vmul.f32 %v729, %v774
        %v790 = vmul.f32 %v730, %v774
        %v791 = vadd.f32 %v754, %v775
        %v792 = vadd.f32 %v755, %v776
        %v793 = vadd.f32 %v756, %v777
        %v794 = vadd.f32 %v757, %v778
        %v795 = vadd.f32 %v758, %v779
        %v796 = vadd.f32 %v759, %v780
        %v797 = vadd.f32 %v760, %v781
        %v798 = vadd.f32 %v761, %v782
        %v799 = vadd.f32 %v762, %v783
        %v800 = vadd.f32 %v763, %v784
        %v801 = vadd.f32 %v764, %v785
        %v802 = vadd.f32 %v765, %v786
        %v803 = vadd.f32 %v766, %v787
        %v804 = vadd.f32 %v767, %v788
        %v805 = vadd.f32 %v768, %v789
        %v806 = vadd.f32 %v769, %v790
        %v807 = vld [vmem:[%s628] sm:$0x1]
        %v808 = vlaneseq
        %v809 = vshrl.u32 %v808, 7
        %v810 = vsub.s32 0, %v809
        %v811 = vrot.slane %v807, %v810
        %v812 = vmul.f32 %v717, %v811
        %v813 = vmul.f32 %v718, %v811
        %v814 = vmul.f32 %v719, %v811
        %v815 = vmul.f32 %v720, %v811
        %v816 = vmul.f32 %v721, %v811
        %v817 = vmul.f32 %v722, %v811
        %v818 = vmul.f32 %v723, %v811
        %v819 = vmul.f32 %v724, %v811
        %v820 = vmul.f32 %v725, %v811
        %v821 = vmul.f32 %v726, %v811
        %v822 = vmul.f32 %v727, %v811
        %v823 = vmul.f32 %v728, %v811
        %v824 = vmul.f32 %v729, %v811
        %v825 = vmul.f32 %v730, %v811
        %v826 = vmul.f32 %v731, %v811
        %v827 = vmul.f32 %v732, %v811
        %v828 = vadd.f32 %v791, %v812
        %v829 = vadd.f32 %v792, %v813
        %v830 = vadd.f32 %v793, %v814
        %v831 = vadd.f32 %v794, %v815
        %v832 = vadd.f32 %v795, %v816
        %v833 = vadd.f32 %v796, %v817
        %v834 = vadd.f32 %v797, %v818
        %v835 = vadd.f32 %v798, %v819
        %v836 = vadd.f32 %v799, %v820
        %v837 = vadd.f32 %v800, %v821
        %v838 = vadd.f32 %v801, %v822
        %v839 = vadd.f32 %v802, %v823
        %v840 = vadd.f32 %v803, %v824
        %v841 = vadd.f32 %v804, %v825
        %v842 = vadd.f32 %v805, %v826
        %v843 = vadd.f32 %v806, %v827
        %v844 = vrot.slane %v556, 1
        %v845 = vrot.slane %v557, 1
        %v846 = vrot.slane %v534, 1
        %v847 = vrot.slane %v535, 1
        %v848 = vrot.slane %v536, 1
        %v849 = vrot.slane %v537, 1
        %v850 = vrot.slane %v538, 1
        %v851 = vrot.slane %v539, 1
        %v852 = vrot.slane %v540, 1
        %v853 = vrot.slane %v541, 1
        %v854 = vrot.slane %v542, 1
        %v855 = vrot.slane %v543, 1
        %v856 = vrot.slane %v544, 1
        %v857 = vrot.slane %v545, 1
        %v858 = vrot.slane %v546, 1
        %v859 = vrot.slane %v547, 1
        %v860 = vrot.slane %v548, 1
        %v861 = vrot.slane %v549, 1
        %v862 = vrot.slane %v564, 1
        %v863 = vrot.slane %v565, 1
        %vm864 = vcmp.lt.s32.totalorder %v567, 7
        %v865 = vsel %vm864, %v862, %v863
        %v866 = vsel %vm864, %v861, %v862
        %v867 = vsel %vm864, %v860, %v861
        %v868 = vsel %vm864, %v859, %v860
        %v869 = vsel %vm864, %v858, %v859
        %v870 = vsel %vm864, %v857, %v858
        %v871 = vsel %vm864, %v856, %v857
        %v872 = vsel %vm864, %v855, %v856
        %v873 = vsel %vm864, %v854, %v855
        %v874 = vsel %vm864, %v853, %v854
        %v875 = vsel %vm864, %v852, %v853
        %v876 = vsel %vm864, %v851, %v852
        %v877 = vsel %vm864, %v850, %v851
        %v878 = vsel %vm864, %v849, %v850
        %v879 = vsel %vm864, %v848, %v849
        %v880 = vsel %vm864, %v847, %v848
        %v881 = vsel %vm864, %v846, %v847
        %v882 = vsel %vm864, %v845, %v846
        %v883 = vsel %vm864, %v844, %v845
        %v884 = vsel %vm864, %v863, %v844
        %vm885 = vcmp.lt.s32.totalorder %v567, 15
        %vm886 = vcmp.lt.s32.totalorder %v568, 15
        %v887 = vsel %vm885, 1, 0
        %v888 = vsel %vm886, 1, 0
        %v889 = vcvt.s32.f32 %v887
        %v890 = vcvt.s32.f32 %v888
        %v891 = vmul.f32 %v883, %v889
        %v892 = vmul.f32 %v882, %v890
        %v893 = vmul.f32 %v881, %v889
        %v894 = vmul.f32 %v880, %v890
        %v895 = vmul.f32 %v879, %v889
        %v896 = vmul.f32 %v878, %v890
        %v897 = vmul.f32 %v877, %v889
        %v898 = vmul.f32 %v876, %v890
        %v899 = vmul.f32 %v875, %v889
        %v900 = vmul.f32 %v874, %v890
        %v901 = vmul.f32 %v873, %v889
        %v902 = vmul.f32 %v872, %v890
        %v903 = vmul.f32 %v871, %v889
        %v904 = vmul.f32 %v870, %v890
        %v905 = vmul.f32 %v869, %v889
        %v906 = vmul.f32 %v868, %v890
        %v907 = vmul.f32 %v867, %v889
        %v908 = vmul.f32 %v866, %v890
        %v909 = vmul.f32 %v865, %v889
        %v910 = vmul.f32 %v884, %v890
        %v911 = vld [vmem:[#allocation8 + $0x2] sm:$0x1]
        %v912 = vlaneseq
        %v913 = vshrl.u32 %v912, 7
        %v914 = vsub.s32 0, %v913
        %v915 = vrot.slane %v911, %v914
        %v916 = vmul.f32 %v891, %v915
        %v917 = vmul.f32 %v892, %v915
        %v918 = vmul.f32 %v893, %v915
        %v919 = vmul.f32 %v894, %v915
        %v920 = vmul.f32 %v895, %v915
        %v921 = vmul.f32 %v896, %v915
        %v922 = vmul.f32 %v897, %v915
        %v923 = vmul.f32 %v898, %v915
        %v924 = vmul.f32 %v899, %v915
        %v925 = vmul.f32 %v900, %v915
        %v926 = vmul.f32 %v901, %v915
        %v927 = vmul.f32 %v902, %v915
        %v928 = vmul.f32 %v903, %v915
        %v929 = vmul.f32 %v904, %v915
        %v930 = vmul.f32 %v905, %v915
        %v931 = vmul.f32 %v906, %v915
        %v932 = vadd.f32 %v828, %v916
        %v933 = vadd.f32 %v829, %v917
        %v934 = vadd.f32 %v830, %v918
        %v935 = vadd.f32 %v831, %v919
        %v936 = vadd.f32 %v832, %v920
        %v937 = vadd.f32 %v833, %v921
        %v938 = vadd.f32 %v834, %v922
        %v939 = vadd.f32 %v835, %v923
        %v940 = vadd.f32 %v836, %v924
        %v941 = vadd.f32 %v837, %v925
        %v942 = vadd.f32 %v838, %v926
        %v943 = vadd.f32 %v839, %v927
        %v944 = vadd.f32 %v840, %v928
        %v945 = vadd.f32 %v841, %v929
        %v946 = vadd.f32 %v842, %v930
        %v947 = vadd.f32 %v843, %v931
        %v948 = vld [vmem:[%s590 + $0x2] sm:$0x1]
        %v949 = vlaneseq
        %v950 = vshrl.u32 %v949, 7
        %v951 = vsub.s32 0, %v950
        %v952 = vrot.slane %v948, %v951
        %v953 = vmul.f32 %v893, %v952
        %v954 = vmul.f32 %v894, %v952
        %v955 = vmul.f32 %v895, %v952
        %v956 = vmul.f32 %v896, %v952
        %v957 = vmul.f32 %v897, %v952
        %v958 = vmul.f32 %v898, %v952
        %v959 = vmul.f32 %v899, %v952
        %v960 = vmul.f32 %v900, %v952
        %v961 = vmul.f32 %v901, %v952
        %v962 = vmul.f32 %v902, %v952
        %v963 = vmul.f32 %v903, %v952
        %v964 = vmul.f32 %v904, %v952
        %v965 = vmul.f32 %v905, %v952
        %v966 = vmul.f32 %v906, %v952
        %v967 = vmul.f32 %v907, %v952
        %v968 = vmul.f32 %v908, %v952
        %v969 = vadd.f32 %v932, %v953
        %v970 = vadd.f32 %v933, %v954
        %v971 = vadd.f32 %v934, %v955
        %v972 = vadd.f32 %v935, %v956
        %v973 = vadd.f32 %v936, %v957
        %v974 = vadd.f32 %v937, %v958
        %v975 = vadd.f32 %v938, %v959
        %v976 = vadd.f32 %v939, %v960
        %v977 = vadd.f32 %v940, %v961
        %v978 = vadd.f32 %v941, %v962
        %v979 = vadd.f32 %v942, %v963
        %v980 = vadd.f32 %v943, %v964
        %v981 = vadd.f32 %v944, %v965
        %v982 = vadd.f32 %v945, %v966
        %v983 = vadd.f32 %v946, %v967
        %v984 = vadd.f32 %v947, %v968
        %v985 = vld [vmem:[%s628 + $0x2] sm:$0x1]
        %v986 = vlaneseq
        %v987 = vshrl.u32 %v986, 7
        %v988 = vsub.s32 0, %v987
        %v989 = vrot.slane %v985, %v988
        %v990 = vmul.f32 %v895, %v989
        %v991 = vmul.f32 %v896, %v989
        %v992 = vmul.f32 %v897, %v989
        %v993 = vmul.f32 %v898, %v989
        %v994 = vmul.f32 %v899, %v989
        %v995 = vmul.f32 %v900, %v989
        %v996 = vmul.f32 %v901, %v989
        %v997 = vmul.f32 %v902, %v989
        %v998 = vmul.f32 %v903, %v989
        %v999 = vmul.f32 %v904, %v989
        %v1000 = vmul.f32 %v905, %v989
        %v1001 = vmul.f32 %v906, %v989
        %v1002 = vmul.f32 %v907, %v989
        %v1003 = vmul.f32 %v908, %v989
        %v1004 = vmul.f32 %v909, %v989
        %v1005 = vmul.f32 %v910, %v989
        %v1006 = vadd.f32 %v969, %v990
        %v1007 = vadd.f32 %v970, %v991
        %v1008 = vadd.f32 %v971, %v992
        %v1009 = vadd.f32 %v972, %v993
        %v1010 = vadd.f32 %v973, %v994
        %v1011 = vadd.f32 %v974, %v995
        %v1012 = vadd.f32 %v975, %v996
        %v1013 = vadd.f32 %v976, %v997
        %v1014 = vadd.f32 %v977, %v998
        %v1015 = vadd.f32 %v978, %v999
        %v1016 = vadd.f32 %v979, %v1000
        %v1017 = vadd.f32 %v980, %v1001
        %v1018 = vadd.f32 %v981, %v1002
        %v1019 = vadd.f32 %v982, %v1003
        %v1020 = vadd.f32 %v983, %v1004
        %v1021 = vadd.f32 %v984, %v1005
        %v1022 = vld [vmem:[%s4] sm:$0x1]
        %v1024 = vlaneseq
        %v1025 = vshrl.u32 %v1024, 7
        %v1026 = vsub.s32 0, %v1025
        %v1027 = vrot.slane %v1022, %v1026
        %v1029 = vadd.f32 %v1006, %v1027
        %v1030 = vadd.f32 %v1007, %v1027
        %v1031 = vadd.f32 %v1008, %v1027
        %v1032 = vadd.f32 %v1009, %v1027
        %v1033 = vadd.f32 %v1010, %v1027
        %v1034 = vadd.f32 %v1011, %v1027
        %v1035 = vadd.f32 %v1012, %v1027
        %v1036 = vadd.f32 %v1013, %v1027
        %v1037 = vadd.f32 %v1014, %v1027
        %v1038 = vadd.f32 %v1015, %v1027
        %v1039 = vadd.f32 %v1016, %v1027
        %v1040 = vadd.f32 %v1017, %v1027
        %v1041 = vadd.f32 %v1018, %v1027
        %v1042 = vadd.f32 %v1019, %v1027
        %v1043 = vadd.f32 %v1020, %v1027
        %v1044 = vadd.f32 %v1021, %v1027
        %1045 = vadd.xlane.f32.xlu0 %v1029
        %v1046 = vpop.xlane.xlu0 %1045
        %1047 = vadd.xlane.f32.xlu0 %v1030
        %v1048 = vpop.xlane.xlu0 %1047
        %1049 = vadd.xlane.f32.xlu0 %v1031
        %v1050 = vpop.xlane.xlu0 %1049
        %1051 = vadd.xlane.f32.xlu0 %v1032
        %v1052 = vpop.xlane.xlu0 %1051
        %1053 = vadd.xlane.f32.xlu0 %v1033
        %v1054 = vpop.xlane.xlu0 %1053
        %1055 = vadd.xlane.f32.xlu0 %v1034
        %v1056 = vpop.xlane.xlu0 %1055
        %1057 = vadd.xlane.f32.xlu0 %v1035
        %v1058 = vpop.xlane.xlu0 %1057
        %1059 = vadd.xlane.f32.xlu0 %v1036
        %v1060 = vpop.xlane.xlu0 %1059
        %1061 = vadd.xlane.f32.xlu0 %v1037
        %v1062 = vpop.xlane.xlu0 %1061
        %1063 = vadd.xlane.f32.xlu0 %v1038
        %v1064 = vpop.xlane.xlu0 %1063
        %1065 = vadd.xlane.f32.xlu0 %v1039
        %v1066 = vpop.xlane.xlu0 %1065
        %1067 = vadd.xlane.f32.xlu0 %v1040
        %v1068 = vpop.xlane.xlu0 %1067
        %1069 = vadd.xlane.f32.xlu0 %v1041
        %v1070 = vpop.xlane.xlu0 %1069
        %1071 = vadd.xlane.f32.xlu0 %v1042
        %v1072 = vpop.xlane.xlu0 %1071
        %1073 = vadd.xlane.f32.xlu0 %v1043
        %v1074 = vpop.xlane.xlu0 %1073
        %1075 = vadd.xlane.f32.xlu0 %v1044
        %v1076 = vpop.xlane.xlu0 %1075
        %v1077 = vmul.f32 %v1046, 0.33333334
        %v1078 = vmul.f32 %v1048, 0.33333334
        %v1079 = vmul.f32 %v1050, 0.33333334
        %v1080 = vmul.f32 %v1052, 0.33333334
        %v1081 = vmul.f32 %v1054, 0.33333334
        %v1082 = vmul.f32 %v1056, 0.33333334
        %v1083 = vmul.f32 %v1058, 0.33333334
        %v1084 = vmul.f32 %v1060, 0.33333334
        %v1085 = vmul.f32 %v1062, 0.33333334
        %v1086 = vmul.f32 %v1064, 0.33333334
        %v1087 = vmul.f32 %v1066, 0.33333334
        %v1088 = vmul.f32 %v1068, 0.33333334
        %v1089 = vmul.f32 %v1070, 0.33333334
        %v1090 = vmul.f32 %v1072, 0.33333334
        %v1091 = vmul.f32 %v1074, 0.33333334
        %v1092 = vmul.f32 %v1076, 0.33333334
        %v1093 = vmul.f32 %v1029, %v1029
        %v1094 = vmul.f32 %v1030, %v1030
        %v1095 = vmul.f32 %v1031, %v1031
        %v1096 = vmul.f32 %v1032, %v1032
        %v1097 = vmul.f32 %v1033, %v1033
        %v1098 = vmul.f32 %v1034, %v1034
        %v1099 = vmul.f32 %v1035, %v1035
        %v1100 = vmul.f32 %v1036, %v1036
        %v1101 = vmul.f32 %v1037, %v1037
        %v1102 = vmul.f32 %v1038, %v1038
        %v1103 = vmul.f32 %v1039, %v1039
        %v1104 = vmul.f32 %v1040, %v1040
        %v1105 = vmul.f32 %v1041, %v1041
        %v1106 = vmul.f32 %v1042, %v1042
        %v1107 = vmul.f32 %v1043, %v1043
        %v1108 = vmul.f32 %v1044, %v1044
        %1109 = vadd.xlane.f32.xlu0 %v1093
        %v1110 = vpop.xlane.xlu0 %1109
        %1111 = vadd.xlane.f32.xlu0 %v1094
        %v1112 = vpop.xlane.xlu0 %1111
        %1113 = vadd.xlane.f32.xlu0 %v1095
        %v1114 = vpop.xlane.xlu0 %1113
        %1115 = vadd.xlane.f32.xlu0 %v1096
        %v1116 = vpop.xlane.xlu0 %1115
        %1117 = vadd.xlane.f32.xlu0 %v1097
        %v1118 = vpop.xlane.xlu0 %1117
        %1119 = vadd.xlane.f32.xlu0 %v1098
        %v1120 = vpop.xlane.xlu0 %1119
        %1121 = vadd.xlane.f32.xlu0 %v1099
        %v1122 = vpop.xlane.xlu0 %1121
        %1123 = vadd.xlane.f32.xlu0 %v1100
        %v1124 = vpop.xlane.xlu0 %1123
        %1125 = vadd.xlane.f32.xlu0 %v1101
        %v1126 = vpop.xlane.xlu0 %1125
        %1127 = vadd.xlane.f32.xlu0 %v1102
        %v1128 = vpop.xlane.xlu0 %1127
        %1129 = vadd.xlane.f32.xlu0 %v1103
        %v1130 = vpop.xlane.xlu0 %1129
        %1131 = vadd.xlane.f32.xlu0 %v1104
        %v1132 = vpop.xlane.xlu0 %1131
        %1133 = vadd.xlane.f32.xlu0 %v1105
        %v1134 = vpop.xlane.xlu0 %1133
        %1135 = vadd.xlane.f32.xlu0 %v1106
        %v1136 = vpop.xlane.xlu0 %1135
        %1137 = vadd.xlane.f32.xlu0 %v1107
        %v1138 = vpop.xlane.xlu0 %1137
        %1139 = vadd.xlane.f32.xlu0 %v1108
        %v1140 = vpop.xlane.xlu0 %1139
        %v1141 = vmul.f32 %v1110, 0.33333334
        %v1142 = vmul.f32 %v1112, 0.33333334
        %v1143 = vmul.f32 %v1114, 0.33333334
        %v1144 = vmul.f32 %v1116, 0.33333334
        %v1145 = vmul.f32 %v1118, 0.33333334
        %v1146 = vmul.f32 %v1120, 0.33333334
        %v1147 = vmul.f32 %v1122, 0.33333334
        %v1148 = vmul.f32 %v1124, 0.33333334
        %v1149 = vmul.f32 %v1126, 0.33333334
        %v1150 = vmul.f32 %v1128, 0.33333334
        %v1151 = vmul.f32 %v1130, 0.33333334
        %v1152 = vmul.f32 %v1132, 0.33333334
        %v1153 = vmul.f32 %v1134, 0.33333334
        %v1154 = vmul.f32 %v1136, 0.33333334
        %v1155 = vmul.f32 %v1138, 0.33333334
        %v1156 = vmul.f32 %v1140, 0.33333334
        %v1157 = vmul.f32 %v1077, %v1077
        %v1158 = vmul.f32 %v1078, %v1078
        %v1159 = vmul.f32 %v1079, %v1079
        %v1160 = vmul.f32 %v1080, %v1080
        %v1161 = vmul.f32 %v1081, %v1081
        %v1162 = vmul.f32 %v1082, %v1082
        %v1163 = vmul.f32 %v1083, %v1083
        %v1164 = vmul.f32 %v1084, %v1084
        %v1165 = vmul.f32 %v1085, %v1085
        %v1166 = vmul.f32 %v1086, %v1086
        %v1167 = vmul.f32 %v1087, %v1087
        %v1168 = vmul.f32 %v1088, %v1088
        %v1169 = vmul.f32 %v1089, %v1089
        %v1170 = vmul.f32 %v1090, %v1090
        %v1171 = vmul.f32 %v1091, %v1091
        %v1172 = vmul.f32 %v1092, %v1092
        %v1173 = vsub.f32 %v1141, %v1157
        %v1174 = vsub.f32 %v1142, %v1158
        %v1175 = vsub.f32 %v1143, %v1159
        %v1176 = vsub.f32 %v1144, %v1160
        %v1177 = vsub.f32 %v1145, %v1161
        %v1178 = vsub.f32 %v1146, %v1162
        %v1179 = vsub.f32 %v1147, %v1163
        %v1180 = vsub.f32 %v1148, %v1164
        %v1181 = vsub.f32 %v1149, %v1165
        %v1182 = vsub.f32 %v1150, %v1166
        %v1183 = vsub.f32 %v1151, %v1167
        %v1184 = vsub.f32 %v1152, %v1168
        %v1185 = vsub.f32 %v1153, %v1169
        %v1186 = vsub.f32 %v1154, %v1170
        %v1187 = vsub.f32 %v1155, %v1171
        %v1188 = vsub.f32 %v1156, %v1172
        %v1189 = vsub.f32 %v1029, %v1077
        %v1190 = vsub.f32 %v1030, %v1078
        %v1191 = vsub.f32 %v1031, %v1079
        %v1192 = vsub.f32 %v1032, %v1080
        %v1193 = vsub.f32 %v1033, %v1081
        %v1194 = vsub.f32 %v1034, %v1082
        %v1195 = vsub.f32 %v1035, %v1083
        %v1196 = vsub.f32 %v1036, %v1084
        %v1197 = vsub.f32 %v1037, %v1085
        %v1198 = vsub.f32 %v1038, %v1086
        %v1199 = vsub.f32 %v1039, %v1087
        %v1200 = vsub.f32 %v1040, %v1088
        %v1201 = vsub.f32 %v1041, %v1089
        %v1202 = vsub.f32 %v1042, %v1090
        %v1203 = vsub.f32 %v1043, %v1091
        %v1204 = vsub.f32 %v1044, %v1092
        %v1205 = vmax.f32 %v1173, 0.0
        %v1206 = vmax.f32 %v1174, 0.0
        %v1207 = vmax.f32 %v1175, 0.0
        %v1208 = vmax.f32 %v1176, 0.0
        %v1209 = vmax.f32 %v1177, 0.0
        %v1210 = vmax.f32 %v1178, 0.0
        %v1211 = vmax.f32 %v1179, 0.0
        %v1212 = vmax.f32 %v1180, 0.0
        %v1213 = vmax.f32 %v1181, 0.0
        %v1214 = vmax.f32 %v1182, 0.0
        %v1215 = vmax.f32 %v1183, 0.0
        %v1216 = vmax.f32 %v1184, 0.0
        %v1217 = vmax.f32 %v1185, 0.0
        %v1218 = vmax.f32 %v1186, 0.0
        %v1219 = vmax.f32 %v1187, 0.0
        %v1220 = vmax.f32 %v1188, 0.0
        %v1221 = vadd.f32 %v1205, 1e-06
        %v1222 = vadd.f32 %v1206, 1e-06
        %v1223 = vadd.f32 %v1207, 1e-06
        %v1224 = vadd.f32 %v1208, 1e-06
        %v1225 = vadd.f32 %v1209, 1e-06
        %v1226 = vadd.f32 %v1210, 1e-06
        %v1227 = vadd.f32 %v1211, 1e-06
        %v1228 = vadd.f32 %v1212, 1e-06
        %v1229 = vadd.f32 %v1213, 1e-06
        %v1230 = vadd.f32 %v1214, 1e-06
        %v1231 = vadd.f32 %v1215, 1e-06
        %v1232 = vadd.f32 %v1216, 1e-06
        %v1233 = vadd.f32 %v1217, 1e-06
        %v1234 = vadd.f32 %v1218, 1e-06
        %v1235 = vadd.f32 %v1219, 1e-06
        %v1236 = vadd.f32 %v1220, 1e-06
        %v1237 = vrsqrt.pop %v1221
        %v1238 = vrsqrt.pop %v1222
        %v1239 = vrsqrt.pop %v1223
        %v1240 = vrsqrt.pop %v1224
        %v1241 = vrsqrt.pop %v1225
        %v1242 = vrsqrt.pop %v1226
        %v1243 = vrsqrt.pop %v1227
        %v1244 = vrsqrt.pop %v1228
        %v1245 = vrsqrt.pop %v1229
        %v1246 = vrsqrt.pop %v1230
        %v1247 = vrsqrt.pop %v1231
        %v1248 = vrsqrt.pop %v1232
        %v1249 = vrsqrt.pop %v1233
        %v1250 = vrsqrt.pop %v1234
        %v1251 = vrsqrt.pop %v1235
        %v1252 = vrsqrt.pop %v1236
        %v1253 = vmul.f32 %v1189, %v1237
        %v1254 = vmul.f32 %v1190, %v1238
        %v1255 = vmul.f32 %v1191, %v1239
        %v1256 = vmul.f32 %v1192, %v1240
        %v1257 = vmul.f32 %v1193, %v1241
        %v1258 = vmul.f32 %v1194, %v1242
        %v1259 = vmul.f32 %v1195, %v1243
        %v1260 = vmul.f32 %v1196, %v1244
        %v1261 = vmul.f32 %v1197, %v1245
        %v1262 = vmul.f32 %v1198, %v1246
        %v1263 = vmul.f32 %v1199, %v1247
        %v1264 = vmul.f32 %v1200, %v1248
        %v1265 = vmul.f32 %v1201, %v1249
        %v1266 = vmul.f32 %v1202, %v1250
        %v1267 = vmul.f32 %v1203, %v1251
        %v1268 = vmul.f32 %v1204, %v1252
        %v1269 = vpack.c.bf16 %v1254, %v1253
        %v1270 = vpack.c.bf16 %v1256, %v1255
        %v1271 = vpack.c.bf16 %v1258, %v1257
        %v1272 = vpack.c.bf16 %v1260, %v1259
        %v1273 = vpack.c.bf16 %v1262, %v1261
        %v1274 = vpack.c.bf16 %v1264, %v1263
        %v1275 = vpack.c.bf16 %v1266, %v1265
        %v1276 = vpack.c.bf16 %v1268, %v1267
        %v1277 = vld [vmem:[#allocation10] sm:$0xf]
        %v1278 = vld [vmem:[#allocation10 + $0x4] sm:$0xf]
        %v1279 = vld [vmem:[#allocation10 + $0x8] sm:$0xf]
        %v1280 = vld [vmem:[#allocation10 + $0xc] sm:$0xf]
        %v1281 = vld [vmem:[#allocation10 + $0x10] sm:$0xf]
        %v1282 = vld [vmem:[#allocation10 + $0x14] sm:$0xf]
        %v1283 = vld [vmem:[#allocation10 + $0x18] sm:$0xf]
        %v1284 = vld [vmem:[#allocation10 + $0x1c] sm:$0xf]
        %v1285 = vld [vmem:[#allocation10 + $0x20] sm:$0xf]
        %v1286 = vld [vmem:[#allocation10 + $0x24] sm:$0xf]
        %v1287 = vld [vmem:[#allocation10 + $0x28] sm:$0xf]
        %v1288 = vld [vmem:[#allocation10 + $0x2c] sm:$0xf]
        %v1289 = vld [vmem:[#allocation10 + $0x30] sm:$0xf]
        %v1290 = vld [vmem:[#allocation10 + $0x34] sm:$0xf]
        %v1291 = vld [vmem:[#allocation10 + $0x38] sm:$0xf]
        %v1292 = vld [vmem:[#allocation10 + $0x3c] sm:$0xf]
        %v1293 = vld [vmem:[%s6] sm:$0x1]
        %v1295 = vlaneseq
        %v1296 = vshrl.u32 %v1295, 7
        %v1297 = vsub.s32 0, %v1296
        %v1298 = vrot.slane %v1293, %v1297
        %v1316 = vunpack.c.l.b16 %v1277
        %v1317 = vunpack.c.l.b16 %v1278
        %v1318 = vunpack.c.l.b16 %v1279
        %v1319 = vunpack.c.l.b16 %v1280
        %v1320 = vunpack.c.l.b16 %v1281
        %v1321 = vunpack.c.l.b16 %v1282
        %v1322 = vunpack.c.l.b16 %v1283
        %v1323 = vunpack.c.l.b16 %v1284
        %v1324 = vunpack.c.l.b16 %v1285
        %v1325 = vunpack.c.l.b16 %v1286
        %v1326 = vunpack.c.l.b16 %v1287
        %v1327 = vunpack.c.l.b16 %v1288
        %v1328 = vunpack.c.l.b16 %v1289
        %v1329 = vunpack.c.l.b16 %v1290
        %v1330 = vunpack.c.l.b16 %v1291
        %v1331 = vunpack.c.l.b16 %v1292
        %v1332 = vpack.c.b16 %v1317, %v1316
        %v1333 = vpack.c.b16 %v1319, %v1318
        %v1334 = vpack.c.b16 %v1321, %v1320
        %v1335 = vpack.c.b16 %v1323, %v1322
        %v1336 = vpack.c.b16 %v1325, %v1324
        %v1337 = vpack.c.b16 %v1327, %v1326
        %v1338 = vpack.c.b16 %v1329, %v1328
        %v1339 = vpack.c.b16 %v1331, %v1330
        %1348 = vmatprep.subr.bf16.mxu0 0
        %1349 = vmatpush1.bf16.msra.mxu0 %v1332
        %1350 = vmatprep.subr.bf16.mxu0 0
        %1351 = vmatpush1.bf16.msra.mxu0 %v1333
        %1352 = vmatprep.subr.bf16.mxu0 0
        %1353 = vmatpush1.bf16.msra.mxu0 %v1334
        %1354 = vmatprep.subr.bf16.mxu0 0
        %1355 = vmatpush1.bf16.msra.mxu0 %v1335
        %1356 = vmatprep.subr.bf16.mxu0 0
        %1357 = vmatpush1.bf16.msra.mxu0 %v1336
        %1358 = vmatprep.subr.bf16.mxu0 0
        %1359 = vmatpush1.bf16.msra.mxu0 %v1337
        %1360 = vmatprep.subr.bf16.mxu0 0
        %1361 = vmatpush1.bf16.msra.mxu0 %v1338
        %1362 = vmatprep.subr.bf16.mxu0 0
        %1363 = vmatpush1.bf16.msra.mxu0 %v1339
        %1364 = vmatprep.subr.bf16.mxu0 0
        %1365 = vmatpush1.bf16.msra.mxu0 0
        %1366 = vmatprep.subr.bf16.mxu0 0
        %1367 = vmatpush1.bf16.msra.mxu0 0
        %1368 = vmatprep.subr.bf16.mxu0 0
        %1369 = vmatpush1.bf16.msra.mxu0 0
        %1370 = vmatprep.subr.bf16.mxu0 0
        %1371 = vmatpush1.bf16.msra.mxu0 0
        %1372 = vmatprep.subr.bf16.mxu0 0
        %1373 = vmatpush1.bf16.msra.mxu0 0
        %1374 = vmatprep.subr.bf16.mxu0 0
        %1375 = vmatpush1.bf16.msra.mxu0 0
        %1376 = vmatprep.subr.bf16.mxu0 0
        %1377 = vmatpush1.bf16.msra.mxu0 0
        %1378 = vmatprep.subr.bf16.mxu0 0
        %1379 = vmatpush1.bf16.msra.mxu0 0
        %1380 = vmatprep.mubr.bf16.mxu0 0
        %1381 = vmatmul.mubr.bf16.gmra.mrb[0].mxu0 %v1269
        %v1382 = vpop.f32.mrb[0].mxu0
        %v1383 = vadd.f32 %v1298, %v1382
        %v1384 = vpop.f32.mrb[0].mxu0
        %v1385 = vpop.f32.mrb[0].mxu0
        %v1386 = vadd.f32 %v1298, %v1385
        %v1387 = vpop.f32.mrb[0].mxu0
        %1388 = vmatprep.mubr.bf16.mxu0 0
        %1389 = vmatmul.mubr.bf16.gmra.mrb[0].mxu0 %v1270
        %v1390 = vpop.f32.mrb[0].mxu0
        %v1391 = vadd.f32 %v1298, %v1390
        %v1392 = vpop.f32.mrb[0].mxu0
        %v1393 = vpop.f32.mrb[0].mxu0
        %v1394 = vadd.f32 %v1298, %v1393
        %v1395 = vpop.f32.mrb[0].mxu0
        %1396 = vmatprep.mubr.bf16.mxu0 0
        %1397 = vmatmul.mubr.bf16.gmra.mrb[0].mxu0 %v1271
        %v1398 = vpop.f32.mrb[0].mxu0
        %v1399 = vadd.f32 %v1298, %v1398
        %v1400 = vpop.f32.mrb[0].mxu0
        %v1401 = vpop.f32.mrb[0].mxu0
        %v1402 = vadd.f32 %v1298, %v1401
        %v1403 = vpop.f32.mrb[0].mxu0
        %1404 = vmatprep.mubr.bf16.mxu0 0
        %1405 = vmatmul.mubr.bf16.gmra.mrb[0].mxu0 %v1272
        %v1406 = vpop.f32.mrb[0].mxu0
        %v1407 = vadd.f32 %v1298, %v1406
        %v1408 = vpop.f32.mrb[0].mxu0
        %v1409 = vpop.f32.mrb[0].mxu0
        %v1410 = vadd.f32 %v1298, %v1409
        %v1411 = vpop.f32.mrb[0].mxu0
        %1412 = vmatprep.mubr.bf16.mxu0 0
        %1413 = vmatmul.mubr.bf16.gmra.mrb[0].mxu0 %v1273
        %v1414 = vpop.f32.mrb[0].mxu0
        %v1415 = vadd.f32 %v1298, %v1414
        %v1416 = vpop.f32.mrb[0].mxu0
        %v1417 = vpop.f32.mrb[0].mxu0
        %v1418 = vadd.f32 %v1298, %v1417
        %v1419 = vpop.f32.mrb[0].mxu0
        %1420 = vmatprep.mubr.bf16.mxu0 0
        %1421 = vmatmul.mubr.bf16.gmra.mrb[0].mxu0 %v1274
        %v1422 = vpop.f32.mrb[0].mxu0
        %v1423 = vadd.f32 %v1298, %v1422
        %v1424 = vpop.f32.mrb[0].mxu0
        %v1425 = vpop.f32.mrb[0].mxu0
        %v1426 = vadd.f32 %v1298, %v1425
        %v1427 = vpop.f32.mrb[0].mxu0
        %1428 = vmatprep.mubr.bf16.mxu0 0
        %1429 = vmatmul.mubr.bf16.gmra.mrb[0].mxu0 %v1275
        %v1430 = vpop.f32.mrb[0].mxu0
        %v1431 = vadd.f32 %v1298, %v1430
        %v1432 = vpop.f32.mrb[0].mxu0
        %v1433 = vpop.f32.mrb[0].mxu0
        %v1434 = vadd.f32 %v1298, %v1433
        %v1435 = vpop.f32.mrb[0].mxu0
        %1436 = vmatprep.mubr.bf16.mxu0 0
        %1437 = vmatmul.mubr.bf16.gmra.mrb[0].mxu0 %v1276
        %v1438 = vpop.f32.mrb[0].mxu0
        %v1439 = vadd.f32 %v1298, %v1438
        %v1440 = vpop.f32.mrb[0].mxu0
        %v1441 = vpop.f32.mrb[0].mxu0
        %v1442 = vadd.f32 %v1298, %v1441
        %v1443 = vpop.f32.mrb[0].mxu0
        %1444 = vdwg.mxu0
        %v1445 = vmul.f32 %v1383, 0.5
        %v1446 = vmul.f32 %v1386, 0.5
        %v1447 = vmul.f32 %v1391, 0.5
        %v1448 = vmul.f32 %v1394, 0.5
        %v1449 = vmul.f32 %v1399, 0.5
        %v1450 = vmul.f32 %v1402, 0.5
        %v1451 = vmul.f32 %v1407, 0.5
        %v1452 = vmul.f32 %v1410, 0.5
        %v1453 = vmul.f32 %v1415, 0.5
        %v1454 = vmul.f32 %v1418, 0.5
        %v1455 = vmul.f32 %v1423, 0.5
        %v1456 = vmul.f32 %v1426, 0.5
        %v1457 = vmul.f32 %v1431, 0.5
        %v1458 = vmul.f32 %v1434, 0.5
        %v1459 = vmul.f32 %v1439, 0.5
        %v1460 = vmul.f32 %v1442, 0.5
        %v1461 = vmul.f32 %v1383, 0.70710677
        %v1462 = vmul.f32 %v1386, 0.70710677
        %v1463 = vmul.f32 %v1391, 0.70710677
        %v1464 = vmul.f32 %v1394, 0.70710677
        %v1465 = vmul.f32 %v1399, 0.70710677
        %v1466 = vmul.f32 %v1402, 0.70710677
        %v1467 = vmul.f32 %v1407, 0.70710677
        %v1468 = vmul.f32 %v1410, 0.70710677
        %v1469 = vmul.f32 %v1415, 0.70710677
        %v1470 = vmul.f32 %v1418, 0.70710677
        %v1471 = vmul.f32 %v1423, 0.70710677
        %v1472 = vmul.f32 %v1426, 0.70710677
        %v1473 = vmul.f32 %v1431, 0.70710677
        %v1474 = vmul.f32 %v1434, 0.70710677
        %v1475 = vmul.f32 %v1439, 0.70710677
        %v1476 = vmul.f32 %v1442, 0.70710677
        %v1477 = verf.f32.pop %v1461
        %v1478 = verf.f32.pop %v1462
        %v1479 = verf.f32.pop %v1463
        %v1480 = verf.f32.pop %v1464
        %v1481 = verf.f32.pop %v1465
        %v1482 = verf.f32.pop %v1466
        %v1483 = verf.f32.pop %v1467
        %v1484 = verf.f32.pop %v1468
        %v1485 = verf.f32.pop %v1469
        %v1486 = verf.f32.pop %v1470
        %v1487 = verf.f32.pop %v1471
        %v1488 = verf.f32.pop %v1472
        %v1489 = verf.f32.pop %v1473
        %v1490 = verf.f32.pop %v1474
        %v1491 = verf.f32.pop %v1475
        %v1492 = verf.f32.pop %v1476
        %v1493 = vadd.f32 %v1477, 1.0
        %v1494 = vadd.f32 %v1478, 1.0
        %v1495 = vadd.f32 %v1479, 1.0
        %v1496 = vadd.f32 %v1480, 1.0
        %v1497 = vadd.f32 %v1481, 1.0
        %v1498 = vadd.f32 %v1482, 1.0
        %v1499 = vadd.f32 %v1483, 1.0
        %v1500 = vadd.f32 %v1484, 1.0
        %v1501 = vadd.f32 %v1485, 1.0
        %v1502 = vadd.f32 %v1486, 1.0
        %v1503 = vadd.f32 %v1487, 1.0
        %v1504 = vadd.f32 %v1488, 1.0
        %v1505 = vadd.f32 %v1489, 1.0
        %v1506 = vadd.f32 %v1490, 1.0
        %v1507 = vadd.f32 %v1491, 1.0
        %v1508 = vadd.f32 %v1492, 1.0
        %v1509 = vmul.f32 %v1445, %v1493
        %v1510 = vmul.f32 %v1446, %v1494
        %v1511 = vmul.f32 %v1447, %v1495
        %v1512 = vmul.f32 %v1448, %v1496
        %v1513 = vmul.f32 %v1449, %v1497
        %v1514 = vmul.f32 %v1450, %v1498
        %v1515 = vmul.f32 %v1451, %v1499
        %v1516 = vmul.f32 %v1452, %v1500
        %v1517 = vmul.f32 %v1453, %v1501
        %v1518 = vmul.f32 %v1454, %v1502
        %v1519 = vmul.f32 %v1455, %v1503
        %v1520 = vmul.f32 %v1456, %v1504
        %v1521 = vmul.f32 %v1457, %v1505
        %v1522 = vmul.f32 %v1458, %v1506
        %v1523 = vmul.f32 %v1459, %v1507
        %v1524 = vmul.f32 %v1460, %v1508
        %v1525 = vpack.c.bf16 %v1510, %v1509
        %v1526 = vpack.c.bf16 %v1512, %v1511
        %v1527 = vpack.c.bf16 %v1514, %v1513
        %v1528 = vpack.c.bf16 %v1516, %v1515
        %v1529 = vpack.c.bf16 %v1518, %v1517
        %v1530 = vpack.c.bf16 %v1520, %v1519
        %v1531 = vpack.c.bf16 %v1522, %v1521
        %v1532 = vpack.c.bf16 %v1524, %v1523
        %v1533 = vpack.c.bf16 %v535, %v534
        %v1534 = vpack.c.bf16 %v537, %v536
        %v1535 = vpack.c.bf16 %v539, %v538
        %v1536 = vpack.c.bf16 %v541, %v540
        %v1537 = vpack.c.bf16 %v543, %v542
        %v1538 = vpack.c.bf16 %v545, %v544
        %v1539 = vpack.c.bf16 %v547, %v546
        %v1540 = vpack.c.bf16 %v549, %v548
        %v1541 = vld [vmem:[#allocation11] sm:$0xf]
        %v1542 = vld [vmem:[#allocation11 + $0x4] sm:$0xf]
        %v1543 = vld [vmem:[#allocation11 + $0x8] sm:$0xf]
        %v1544 = vld [vmem:[#allocation11 + $0xc] sm:$0xf]
        %v1545 = vld [vmem:[#allocation11 + $0x10] sm:$0xf]
        %v1546 = vld [vmem:[#allocation11 + $0x14] sm:$0xf]
        %v1547 = vld [vmem:[#allocation11 + $0x18] sm:$0xf]
        %v1548 = vld [vmem:[#allocation11 + $0x1c] sm:$0xf]
        %v1549 = vld [vmem:[#allocation11 + $0x20] sm:$0xf]
        %v1550 = vld [vmem:[#allocation11 + $0x24] sm:$0xf]
        %v1551 = vld [vmem:[#allocation11 + $0x28] sm:$0xf]
        %v1552 = vld [vmem:[#allocation11 + $0x2c] sm:$0xf]
        %v1553 = vld [vmem:[#allocation11 + $0x30] sm:$0xf]
        %v1554 = vld [vmem:[#allocation11 + $0x34] sm:$0xf]
        %v1555 = vld [vmem:[#allocation11 + $0x38] sm:$0xf]
        %v1556 = vld [vmem:[#allocation11 + $0x3c] sm:$0xf]
        %v1557 = vld [vmem:[#allocation11 + $0x40] sm:$0xf]
        %v1558 = vld [vmem:[#allocation11 + $0x44] sm:$0xf]
        %v1559 = vld [vmem:[#allocation11 + $0x48] sm:$0xf]
        %v1560 = vld [vmem:[#allocation11 + $0x4c] sm:$0xf]
        %v1561 = vld [vmem:[#allocation11 + $0x50] sm:$0xf]
        %v1562 = vld [vmem:[#allocation11 + $0x54] sm:$0xf]
        %v1563 = vld [vmem:[#allocation11 + $0x58] sm:$0xf]
        %v1564 = vld [vmem:[#allocation11 + $0x5c] sm:$0xf]
        %v1565 = vld [vmem:[#allocation11 + $0x60] sm:$0xf]
        %v1566 = vld [vmem:[#allocation11 + $0x64] sm:$0xf]
        %v1567 = vld [vmem:[#allocation11 + $0x68] sm:$0xf]
        %v1568 = vld [vmem:[#allocation11 + $0x6c] sm:$0xf]
        %v1569 = vld [vmem:[#allocation11 + $0x70] sm:$0xf]
        %v1570 = vld [vmem:[#allocation11 + $0x74] sm:$0xf]
        %v1571 = vld [vmem:[#allocation11 + $0x78] sm:$0xf]
        %v1572 = vld [vmem:[#allocation11 + $0x7c] sm:$0xf]
        %v1573 = vld [vmem:[%s8] sm:$0x1]
        %v1575 = vlaneseq
        %v1576 = vshrl.u32 %v1575, 7
        %v1577 = vsub.s32 0, %v1576
        %v1578 = vrot.slane %v1573, %v1577
        %v1612 = vunpack.c.l.b16 %v1541
        %v1613 = vunpack.c.l.b16 %v1542
        %v1614 = vunpack.c.l.b16 %v1543
        %v1615 = vunpack.c.l.b16 %v1544
        %v1616 = vunpack.c.l.b16 %v1545
        %v1617 = vunpack.c.l.b16 %v1546
        %v1618 = vunpack.c.l.b16 %v1547
        %v1619 = vunpack.c.l.b16 %v1548
        %v1620 = vunpack.c.l.b16 %v1549
        %v1621 = vunpack.c.l.b16 %v1550
        %v1622 = vunpack.c.l.b16 %v1551
        %v1623 = vunpack.c.l.b16 %v1552
        %v1624 = vunpack.c.l.b16 %v1553
        %v1625 = vunpack.c.l.b16 %v1554
        %v1626 = vunpack.c.l.b16 %v1555
        %v1627 = vunpack.c.l.b16 %v1556
        %v1628 = vunpack.c.l.b16 %v1557
        %v1629 = vunpack.c.l.b16 %v1558
        %v1630 = vunpack.c.l.b16 %v1559
        %v1631 = vunpack.c.l.b16 %v1560
        %v1632 = vunpack.c.l.b16 %v1561
        %v1633 = vunpack.c.l.b16 %v1562
        %v1634 = vunpack.c.l.b16 %v1563
        %v1635 = vunpack.c.l.b16 %v1564
        %v1636 = vunpack.c.l.b16 %v1565
        %v1637 = vunpack.c.l.b16 %v1566
        %v1638 = vunpack.c.l.b16 %v1567
        %v1639 = vunpack.c.l.b16 %v1568
        %v1640 = vunpack.c.l.b16 %v1569
        %v1641 = vunpack.c.l.b16 %v1570
        %v1642 = vunpack.c.l.b16 %v1571
        %v1643 = vunpack.c.l.b16 %v1572
        %v1644 = vpack.c.b16 %v1613, %v1612
        %v1645 = vpack.c.b16 %v1615, %v1614
        %v1646 = vpack.c.b16 %v1617, %v1616
        %v1647 = vpack.c.b16 %v1619, %v1618
        %v1648 = vpack.c.b16 %v1621, %v1620
        %v1649 = vpack.c.b16 %v1623, %v1622
        %v1650 = vpack.c.b16 %v1625, %v1624
        %v1651 = vpack.c.b16 %v1627, %v1626
        %v1652 = vpack.c.b16 %v1629, %v1628
        %v1653 = vpack.c.b16 %v1631, %v1630
        %v1654 = vpack.c.b16 %v1633, %v1632
        %v1655 = vpack.c.b16 %v1635, %v1634
        %v1656 = vpack.c.b16 %v1637, %v1636
        %v1657 = vpack.c.b16 %v1639, %v1638
        %v1658 = vpack.c.b16 %v1641, %v1640
        %v1659 = vpack.c.b16 %v1643, %v1642
        %1676 = vmatprep.subr.bf16.mxu0 0
        %1677 = vmatpush1.bf16.msra.mxu0 %v1644
        %1678 = vmatprep.subr.bf16.mxu0 0
        %1679 = vmatpush1.bf16.msra.mxu0 %v1645
        %1680 = vmatprep.subr.bf16.mxu0 0
        %1681 = vmatpush1.bf16.msra.mxu0 %v1646
        %1682 = vmatprep.subr.bf16.mxu0 0
        %1683 = vmatpush1.bf16.msra.mxu0 %v1647
        %1684 = vmatprep.subr.bf16.mxu0 0
        %1685 = vmatpush1.bf16.msra.mxu0 %v1648
        %1686 = vmatprep.subr.bf16.mxu0 0
        %1687 = vmatpush1.bf16.msra.mxu0 %v1649
        %1688 = vmatprep.subr.bf16.mxu0 0
        %1689 = vmatpush1.bf16.msra.mxu0 %v1650
        %1690 = vmatprep.subr.bf16.mxu0 0
        %1691 = vmatpush1.bf16.msra.mxu0 %v1651
        %1692 = vmatprep.subr.bf16.mxu0 0
        %1693 = vmatpush1.bf16.msra.mxu0 %v1652
        %1694 = vmatprep.subr.bf16.mxu0 0
        %1695 = vmatpush1.bf16.msra.mxu0 %v1653
        %1696 = vmatprep.subr.bf16.mxu0 0
        %1697 = vmatpush1.bf16.msra.mxu0 %v1654
        %1698 = vmatprep.subr.bf16.mxu0 0
        %1699 = vmatpush1.bf16.msra.mxu0 %v1655
        %1700 = vmatprep.subr.bf16.mxu0 0
        %1701 = vmatpush1.bf16.msra.mxu0 %v1656
        %1702 = vmatprep.subr.bf16.mxu0 0
        %1703 = vmatpush1.bf16.msra.mxu0 %v1657
        %1704 = vmatprep.subr.bf16.mxu0 0
        %1705 = vmatpush1.bf16.msra.mxu0 %v1658
        %1706 = vmatprep.subr.bf16.mxu0 0
        %1707 = vmatpush1.bf16.msra.mxu0 %v1659
        %1708 = vmatprep.mubr.bf16.mxu0 %v1533
        %1709 = vmatmul.mubr.bf16.gmra.mrb[0].mxu0 %v1525
        %v1710 = vpop.f32.mrb[0].mxu0
        %v1711 = vadd.f32 %v1578, %v1710
        %v1712 = vpop.f32.mrb[0].mxu0
        %v1713 = vpop.f32.mrb[0].mxu0
        %v1714 = vadd.f32 %v1578, %v1713
        %v1715 = vpop.f32.mrb[0].mxu0
        %1716 = vmatprep.mubr.bf16.mxu0 %v1534
        %1717 = vmatmul.mubr.bf16.gmra.mrb[0].mxu0 %v1526
        %v1718 = vpop.f32.mrb[0].mxu0
        %v1719 = vadd.f32 %v1578, %v1718
        %v1720 = vpop.f32.mrb[0].mxu0
        %v1721 = vpop.f32.mrb[0].mxu0
        %v1722 = vadd.f32 %v1578, %v1721
        %v1723 = vpop.f32.mrb[0].mxu0
        %1724 = vmatprep.mubr.bf16.mxu0 %v1535
        %1725 = vmatmul.mubr.bf16.gmra.mrb[0].mxu0 %v1527
        %v1726 = vpop.f32.mrb[0].mxu0
        %v1727 = vadd.f32 %v1578, %v1726
        %v1728 = vpop.f32.mrb[0].mxu0
        %v1729 = vpop.f32.mrb[0].mxu0
        %v1730 = vadd.f32 %v1578, %v1729
        %v1731 = vpop.f32.mrb[0].mxu0
        %1732 = vmatprep.mubr.bf16.mxu0 %v1536
        %1733 = vmatmul.mubr.bf16.gmra.mrb[0].mxu0 %v1528
        %v1734 = vpop.f32.mrb[0].mxu0
        %v1735 = vadd.f32 %v1578, %v1734
        %v1736 = vpop.f32.mrb[0].mxu0
        %v1737 = vpop.f32.mrb[0].mxu0
        %v1738 = vadd.f32 %v1578, %v1737
        %v1739 = vpop.f32.mrb[0].mxu0
        %1740 = vmatprep.mubr.bf16.mxu0 %v1537
        %1741 = vmatmul.mubr.bf16.gmra.mrb[0].mxu0 %v1529
        %v1742 = vpop.f32.mrb[0].mxu0
        %v1743 = vadd.f32 %v1578, %v1742
        %v1744 = vpop.f32.mrb[0].mxu0
        %v1745 = vpop.f32.mrb[0].mxu0
        %v1746 = vadd.f32 %v1578, %v1745
        %v1747 = vpop.f32.mrb[0].mxu0
        %1748 = vmatprep.mubr.bf16.mxu0 %v1538
        %1749 = vmatmul.mubr.bf16.gmra.mrb[0].mxu0 %v1530
        %v1750 = vpop.f32.mrb[0].mxu0
        %v1751 = vadd.f32 %v1578, %v1750
        %v1752 = vpop.f32.mrb[0].mxu0
        %v1753 = vpop.f32.mrb[0].mxu0
        %v1754 = vadd.f32 %v1578, %v1753
        %v1755 = vpop.f32.mrb[0].mxu0
        %1756 = vmatprep.mubr.bf16.mxu0 %v1539
        %1757 = vmatmul.mubr.bf16.gmra.mrb[0].mxu0 %v1531
        %v1758 = vpop.f32.mrb[0].mxu0
        %v1759 = vadd.f32 %v1578, %v1758
        %v1760 = vpop.f32.mrb[0].mxu0
        %v1761 = vpop.f32.mrb[0].mxu0
        %v1762 = vadd.f32 %v1578, %v1761
        %v1763 = vpop.f32.mrb[0].mxu0
        %1764 = vmatprep.mubr.bf16.mxu0 %v1540
        %1765 = vmatmul.mubr.bf16.gmra.mrb[0].mxu0 %v1532
        %v1766 = vpop.f32.mrb[0].mxu0
        %v1767 = vadd.f32 %v1578, %v1766
        %v1768 = vpop.f32.mrb[0].mxu0
        %v1769 = vpop.f32.mrb[0].mxu0
        %v1770 = vadd.f32 %v1578, %v1769
        %v1771 = vpop.f32.mrb[0].mxu0
        %1772 = vdwg.mxu0
        %v1773 = vpack.c.bf16 %v1714, %v1711
        %v1774 = vpack.c.bf16 %v1722, %v1719
        %v1775 = vpack.c.bf16 %v1730, %v1727
        %v1776 = vpack.c.bf16 %v1738, %v1735
        %v1777 = vpack.c.bf16 %v1746, %v1743
        %v1778 = vpack.c.bf16 %v1754, %v1751
        %v1779 = vpack.c.bf16 %v1762, %v1759
        %v1780 = vpack.c.bf16 %v1770, %v1767
        %v1789 = vunpack.c.l.b16 %v1773
        %v1790 = vunpack.c.h.b16 %v1773
        %v1791 = vunpack.c.l.b16 %v1774
        %v1792 = vunpack.c.h.b16 %v1774
        %v1793 = vunpack.c.l.b16 %v1775
        %v1794 = vunpack.c.h.b16 %v1775
        %v1795 = vunpack.c.l.b16 %v1776
        %v1796 = vunpack.c.h.b16 %v1776
        %v1797 = vunpack.c.l.b16 %v1777
        %v1798 = vunpack.c.h.b16 %v1777
        %v1799 = vunpack.c.l.b16 %v1778
        %v1800 = vunpack.c.h.b16 %v1778
        %v1801 = vunpack.c.l.b16 %v1779
        %v1802 = vunpack.c.h.b16 %v1779
        %v1803 = vunpack.c.l.b16 %v1780
        %v1804 = vunpack.c.h.b16 %v1780
        %v1805 = vpack.c.b16 %v1789, %v1789
        %v1806 = vpack.c.b16 %v1790, %v1790
        %v1807 = vpack.c.b16 %v1791, %v1791
        %v1808 = vpack.c.b16 %v1792, %v1792
        %v1809 = vpack.c.b16 %v1793, %v1793
        %v1810 = vpack.c.b16 %v1794, %v1794
        %v1811 = vpack.c.b16 %v1795, %v1795
        %v1812 = vpack.c.b16 %v1796, %v1796
        %v1813 = vpack.c.b16 %v1797, %v1797
        %v1814 = vpack.c.b16 %v1798, %v1798
        %v1815 = vpack.c.b16 %v1799, %v1799
        %v1816 = vpack.c.b16 %v1800, %v1800
        %v1817 = vpack.c.b16 %v1801, %v1801
        %v1818 = vpack.c.b16 %v1802, %v1802
        %v1819 = vpack.c.b16 %v1803, %v1803
        %v1820 = vpack.c.b16 %v1804, %v1804
        %1837 = vst [vmem:[%s522] sm:$0xf] %v1805
        %1838 = vst [vmem:[%s522 + $0x4] sm:$0xf] %v1806
        %1839 = vst [vmem:[%s522 + $0x8] sm:$0xf] %v1807
        %1840 = vst [vmem:[%s522 + $0xc] sm:$0xf] %v1808
        %1841 = vst [vmem:[%s522 + $0x10] sm:$0xf] %v1809
        %1842 = vst [vmem:[%s522 + $0x14] sm:$0xf] %v1810
        %1843 = vst [vmem:[%s522 + $0x18] sm:$0xf] %v1811
        %1844 = vst [vmem:[%s522 + $0x1c] sm:$0xf] %v1812
        %1845 = vst [vmem:[%s522 + $0x20] sm:$0xf] %v1813
        %1846 = vst [vmem:[%s522 + $0x24] sm:$0xf] %v1814
        %1847 = vst [vmem:[%s522 + $0x28] sm:$0xf] %v1815
        %1848 = vst [vmem:[%s522 + $0x2c] sm:$0xf] %v1816
        %1849 = vst [vmem:[%s522 + $0x30] sm:$0xf] %v1817
        %1850 = vst [vmem:[%s522 + $0x34] sm:$0xf] %v1818
        %1851 = vst [vmem:[%s522 + $0x38] sm:$0xf] %v1819
        %1852 = vst [vmem:[%s522 + $0x3c] sm:$0xf] %v1820
        %s1853 = sand.u32 %s279, 1
        %s1854 = scalar_lea.sflag [#allocation4], %s1853
        %s1855 = sand.u32 %s279, 1
        %s1856 = smul.addr %s1855, 64
        %s1857 = scalar_lea.vmem [#allocation13], %s1856
        // Predicated region
        $region81: #{tpu_custom_call.1} parent=55 // pred_check
          %p1858 = pneg %p289
        $region82: #{tpu_custom_call.1} parent=55 // pred_check_branch
          %1860 = sbr.rel (%p1858) target = $region84
        $region83: #{tpu_custom_call.1} parent=55 // pred_region
          %s1861 = smul.u32 8, %s36
          %s1863 = ssub.s32 1024, 1024
          %1864 = vsyncadd %s1854, %s1863
          %s1865 = smul.addr %s1861, 2
          %s1866 = smul.addr %s35, 32
          %s1867 = sadd.s32 %s1865, %s1866
          %s1868 = smul.addr %s1867, 64
          %s1869 = scalar_lea.hbm %s9, %s1868
          %s1870 = sshll.u32 %s1857, 4
          %s1871 = int_to_ptr.vmem [resolvable:$true] %s1870
          %1876 = dma.vmem_to_hbm [thread:$0]  %s1871, 1024, %s1869, %s1854, 64, 64, 4
        $region84: #{tpu_custom_call.1} parent=55 // pred_fallthru
          _
      $region56: #{tpu_custom_call.1} parent=5 // pred_fallthru
        _
      %p1877 = scmp.le.s32.totalorder 2, %s26
      // Predicated region
      $region85: #{tpu_custom_call.1} parent=5 // pred_check
        %p1878 = pneg %p1877
      $region86: #{tpu_custom_call.1} parent=5 // pred_check_branch
        %1880 = sbr.rel (%p1878) target = $region88
      $region87: #{tpu_custom_call.1} parent=5 // pred_region
        %s1881 = ssub.s32 %s26, 2
        // Predicated region
        $region89: #{tpu_custom_call.1} parent=87 // pred_check
          %p1882 = pneg %p295
        $region90: #{tpu_custom_call.1} parent=87 // pred_check_branch
          %1884 = sbr.rel (%p1882) target = $region92
        $region91: #{tpu_custom_call.1} parent=87 // pred_region
          %s1885 = sand.u32 %s280, 1
          %s1886 = scalar_lea.sflag [#allocation4], %s1885
          %s1887 = sand.u32 %s280, 1
          %s1888 = smul.addr %s1887, 64
          %s1889 = scalar_lea.vmem [#allocation13], %s1888
          %1890 = dma.done %s1886, 1024
        $region92: #{tpu_custom_call.1} parent=87 // pred_fallthru
          _
      $region88: #{tpu_custom_call.1} parent=5 // pred_fallthru
        _
    $region6: #{tpu_custom_call.1} parent=1 // loop_footer
      %s30 = sadd.s32 1, %s26
    $region7: #{tpu_custom_call.1} parent=1 // loop_footer_branch
      %25 = sbr.rel target = $region3
    $region8: #{tpu_custom_call.1} parent=1 // loop_exit
      _
    %1891 = vsyncpa [#allocation3], 1
    %s1892 = scalar_lea.sflag [#allocation3], 1
    %1893 = vsyncpa %s1892, 1
    %1894 = vsyncpa [#allocation6], 1
    %s1895 = scalar_lea.sflag [#allocation6], 1
    %1896 = vsyncpa %s1895, 1
    %1897 = vsyncpa [#allocation9], 1
    %1898 = vsyncpa [#allocation12], 1
    %1899 = vsyncpa [#allocation4], 1
    %s1900 = scalar_lea.sflag [#allocation4], 1
    %1901 = vsyncpa %s1900, 1

</llo_original>
